<compile_context>
chip_gen: v7x
topology: tpu7x:2x2x1
jax: 0.10.0
libtpu: 0.0.40
codegen_flags: <defaults>
</compile_context>

<pallas_src>
import jax
import jax.numpy as jnp
from jax.experimental import pallas as pl
from jax.experimental.pallas import tpu as pltpu


# ----------------------------------------------------------------------------
# Kernel: whole forward pass fused, one batch tile per grid step.
# ----------------------------------------------------------------------------
def concat_net_2_kernel(
    img_ref, aud_ref,
    w2_ref, b2_ref,            # fc2: img branch   (D_img, 512) bf16 / (1, 512) f32
    w1_ref, b1_ref,            # fc1: audio branch (D_aud, 512) bf16 / (1, 512) f32
    w3a_ref, w3b_ref, b3_ref,  # fc3 split: (512,128) img-half + (512,128) aud-half
    w4_ref, b4_ref,            # fc4: (128, 64)
    w5_ref, b5_ref,            # fused heads: (64, 16) = [fc5_img | fc5_audio]
    out_ref,                   # (TB, 16)
):
    # bf16 operands -> native bf16 MXU, f32 accumulation.
    img = img_ref[...].astype(jnp.bfloat16)
    aud = aud_ref[...].astype(jnp.bfloat16)

    # out_img1 = relu(fc2(img)); dropout_5 -> identity (eval)
    h_img = jnp.maximum(
        jnp.dot(img, w2_ref[...], preferred_element_type=jnp.float32) + b2_ref[...],
        0.0,
    ).astype(jnp.bfloat16)
    # out_audio1 = relu(fc1(audio)); dropout_5 -> identity (eval)
    h_aud = jnp.maximum(
        jnp.dot(aud, w1_ref[...], preferred_element_type=jnp.float32) + b1_ref[...],
        0.0,
    ).astype(jnp.bfloat16)

    # out2 = relu(fc3(cat([h_img, h_aud], dim=1))); dropout_2 -> identity
    h3 = jnp.maximum(
        jnp.dot(h_img, w3a_ref[...], preferred_element_type=jnp.float32)
        + jnp.dot(h_aud, w3b_ref[...], preferred_element_type=jnp.float32)
        + b3_ref[...],
        0.0,
    ).astype(jnp.bfloat16)

    # out3 = relu(fc4(out2)); dropout_2 -> identity
    h4 = jnp.maximum(
        jnp.dot(h3, w4_ref[...], preferred_element_type=jnp.float32) + b4_ref[...],
        0.0,
    ).astype(jnp.bfloat16)

    # fused heads: cols [0:8] = fc5_img, cols [8:16] = fc5_audio
    out_ref[...] = (
        jnp.dot(h4, w5_ref[...], preferred_element_type=jnp.float32) + b5_ref[...]
    )


# ----------------------------------------------------------------------------
# One-time parameter preparation (transpose / split / fuse / cast).
# ----------------------------------------------------------------------------
def prepare_params(params):
    """PyTorch-layout params -> kernel layout.  Call ONCE, reuse the result."""
    h = params["fc2_w"].shape[0]  # 512: width of each branch
    prep = {
        "w2": params["fc2_w"].T.astype(jnp.bfloat16),
        "b2": params["fc2_b"][None, :].astype(jnp.float32),
        "w1": params["fc1_w"].T.astype(jnp.bfloat16),
        "b1": params["fc1_b"][None, :].astype(jnp.float32),
    }
    w3 = params["fc3_w"].T.astype(jnp.bfloat16)          # (1024, 128)
    prep["w3a"] = w3[:h]                                 # multiplies img half
    prep["w3b"] = w3[h:]                                 # multiplies audio half
    prep["b3"] = params["fc3_b"][None, :].astype(jnp.float32)
    prep["w4"] = params["fc4_w"].T.astype(jnp.bfloat16)
    prep["b4"] = params["fc4_b"][None, :].astype(jnp.float32)
    prep["w5"] = jnp.concatenate(
        [params["fc5_img_w"].T, params["fc5_audio_w"].T], axis=1
    ).astype(jnp.bfloat16)                               # (64, 16)
    prep["b5"] = jnp.concatenate(
        [params["fc5_img_b"], params["fc5_audio_b"]]
    )[None, :].astype(jnp.float32)                       # (1, 16)
    return jax.tree_util.tree_map(jnp.asarray, prep)


# ----------------------------------------------------------------------------
# Wrapper
# ----------------------------------------------------------------------------
def _round_up(x, m):
    return ((x + m - 1) // m) * m


def _vmem_capacity_bytes():
    try:
        return int(pltpu.get_tpu_info().vmem_capacity_bytes)
    except Exception:
        # Conservative default: assume the smallest per-core VMEM (v7x, 64 MiB).
        return 64 << 20


def _replicated_spec(arr):
    # Whole array as one block, same block index every grid step: DMA'd once,
    # stays VMEM-resident.  Buffered(1): no double-buffer for static blocks.
    idx = lambda i: (0, 0)
    try:
        return pl.BlockSpec(arr.shape, idx, pipeline_mode=pl.Buffered(1))
    except (TypeError, AttributeError):
        return pl.BlockSpec(arr.shape, idx)


def concat_net_2_forward(img_feats, audio_feats, prep):
    B, d_img = img_feats.shape
    _, d_aud = audio_feats.shape
    h_out = prep["w5"].shape[1]  # 16 (fused heads)

    vmem_cap = _vmem_capacity_bytes()
    small_vmem = vmem_cap <= (96 << 20)          # v7x-class part (64 MiB / TC)
    tb_cap = 256 if small_vmem else 512

    # Batch tiling.  For B >= 16 guarantee >= 2 grid steps so the "parallel"
    # batch axis can shard across 2 TensorCores (v7x); tiles are multiples of 8
    # rows (sublane aligned).  Last block may be ragged -> Pallas handles it;
    # garbage rows are sliced off below.
    if B < 16:
        tb = B
    else:
        tb = min(tb_cap, _round_up(pl.cdiv(B, 2), 8))
    grid = (pl.cdiv(B, tb),)

    in_specs = [
        pl.BlockSpec((tb, d_img), lambda i: (i, 0)),
        pl.BlockSpec((tb, d_aud), lambda i: (i, 0)),
        _replicated_spec(prep["w2"]), _replicated_spec(prep["b2"]),
        _replicated_spec(prep["w1"]), _replicated_spec(prep["b1"]),
        _replicated_spec(prep["w3a"]), _replicated_spec(prep["w3b"]),
        _replicated_spec(prep["b3"]),
        _replicated_spec(prep["w4"]), _replicated_spec(prep["b4"]),
        _replicated_spec(prep["w5"]), _replicated_spec(prep["b5"]),
    ]
    out_specs = pl.BlockSpec((tb, h_out), lambda i: (i, 0))

    # VMEM budget: 1x weights (single-buffered, constant index_map)
    #            + 2x batch tiles (double-buffered in/out) + headroom.
    def nbytes(a):
        return a.size * a.dtype.itemsize

    weight_bytes = sum(nbytes(v) for v in prep.values())
    tile_bytes = (
        tb * d_img * img_feats.dtype.itemsize
        + tb * d_aud * audio_feats.dtype.itemsize
        + tb * h_out * 4
    )
    vmem_limit = int(weight_bytes + 2 * tile_bytes + (6 << 20))
    cap = (56 << 20) if small_vmem else (100 << 20)
    vmem_limit = max(16 << 20, min(vmem_limit, cap))

    out = pl.pallas_call(
        concat_net_2_kernel,
        out_shape=jax.ShapeDtypeStruct((B, h_out), jnp.float32),
        grid=grid,
        in_specs=in_specs,
        out_specs=out_specs,
        compiler_params=pltpu.CompilerParams(
            dimension_semantics=("parallel",),
            vmem_limit_bytes=vmem_limit,
        ),
    )(
        img_feats, audio_feats,
        prep["w2"], prep["b2"], prep["w1"], prep["b1"],
        prep["w3a"], prep["w3b"], prep["b3"],
        prep["w4"], prep["b4"],
        prep["w5"], prep["b5"],
    )

    return out[:, :8], out[:, 8:]   # (out_img, out_audio)


# ----------------------------------------------------------------------------
# Deterministic parameter init (PyTorch Linear-style uniform(-1/sqrt(fan_in)))
# ----------------------------------------------------------------------------
def init_params(key, img_input_dims, audio_input_dims):
    def linear(k, fan_in, fan_out):
        kw, kb = jax.random.split(k)
        bound = 1.0 / jnp.sqrt(fan_in)
        w = jax.random.uniform(kw, (fan_out, fan_in), jnp.float32, -bound, bound)
        b = jax.random.uniform(kb, (fan_out,), jnp.float32, -bound, bound)
        return w, b

    keys = jax.random.split(key, 6)
    p = {}
    p["fc1_w"], p["fc1_b"] = linear(keys[0], audio_input_dims, 512)
    p["fc2_w"], p["fc2_b"] = linear(keys[1], img_input_dims, 512)
    p["fc3_w"], p["fc3_b"] = linear(keys[2], 512 * 2, 128)
    p["fc4_w"], p["fc4_b"] = linear(keys[3], 128, 64)
    p["fc5_audio_w"], p["fc5_audio_b"] = linear(keys[4], 64, 8)
    p["fc5_img_w"], p["fc5_img_b"] = linear(keys[5], 64, 8)
    return p


def reference_forward(img_feats, audio_feats, p):
    """Pure-JAX f32 reference, mirrors the PyTorch forward (eval mode)."""
    relu = lambda x: jnp.maximum(x, 0.0)
    h_img = relu(img_feats @ p["fc2_w"].T + p["fc2_b"])
    h_aud = relu(audio_feats @ p["fc1_w"].T + p["fc1_b"])
    cat = jnp.concatenate([h_img, h_aud], axis=1)
    h3 = relu(cat @ p["fc3_w"].T + p["fc3_b"])
    h4 = relu(h3 @ p["fc4_w"].T + p["fc4_b"])
    out_img = h4 @ p["fc5_img_w"].T + p["fc5_img_b"]
    out_aud = h4 @ p["fc5_audio_w"].T + p["fc5_audio_b"]
    return out_img, out_aud


if __name__ == "__main__":
    # Small shapes consistent with the module (stand in for 8192 / 3887 dims).
    B = 4
    IMG_DIMS = 256
    AUD_DIMS = 160

    key = jax.random.PRNGKey(0)
    k_img, k_aud, k_params = jax.random.split(key, 3)

    img_feats = jax.random.normal(k_img, (B, IMG_DIMS), jnp.float32)
    audio_feats = jax.random.normal(k_aud, (B, AUD_DIMS), jnp.float32)
    params = init_params(k_params, IMG_DIMS, AUD_DIMS)

    # TODO(synk): dropout_2 / dropout_5 implemented as identity (eval mode);
    # stochastic training-mode dropout would use pltpu.prng_* in-kernel.

    prep = prepare_params(params)          # one-time layout/cast work
    jax.block_until_ready(prep)

    out_img, out_aud = concat_net_2_forward(img_feats, audio_feats, prep)
    jax.block_until_ready((out_img, out_aud))

    ref_img, ref_aud = reference_forward(img_feats, audio_feats, params)
    assert out_img.shape == (B, 8) and out_aud.shape == (B, 8)
    # bf16 weights/activations -> loosened tolerance vs the f32 reference.
    assert jnp.allclose(out_img, ref_img, atol=5e-2, rtol=5e-2)
    assert jnp.allclose(out_aud, ref_aud, atol=5e-2, rtol=5e-2)

    print("KERNEL_OK")
</pallas_src>

<mosaic_0001>
module attributes {stable_mosaic.version = 11 : i64} {
  func.func @concat_net_2_kernel(%arg0: i32, %arg1: memref<4x256xf32, #tpu.memory_space<vmem>>, %arg2: memref<4x160xf32, #tpu.memory_space<vmem>>, %arg3: memref<256x512xbf16, #tpu.memory_space<vmem>>, %arg4: memref<1x512xf32, #tpu.memory_space<vmem>>, %arg5: memref<160x512xbf16, #tpu.memory_space<vmem>>, %arg6: memref<1x512xf32, #tpu.memory_space<vmem>>, %arg7: memref<512x128xbf16, #tpu.memory_space<vmem>>, %arg8: memref<512x128xbf16, #tpu.memory_space<vmem>>, %arg9: memref<1x128xf32, #tpu.memory_space<vmem>>, %arg10: memref<128x64xbf16, #tpu.memory_space<vmem>>, %arg11: memref<1x64xf32, #tpu.memory_space<vmem>>, %arg12: memref<64x16xbf16, #tpu.memory_space<vmem>>, %arg13: memref<1x16xf32, #tpu.memory_space<vmem>>, %arg14: memref<4x16xf32, #tpu.memory_space<vmem>>) attributes {dimension_semantics = [#tpu.dimension_semantics<parallel>], iteration_bounds = array<i64: 1>, scalar_prefetch = 0 : i64, scratch_operands = 0 : i64, tpu.core_type = #tpu.core_type<tc>, window_params = [{transform_indices = @transform_0, window_bounds = array<i64: 4, 256>}, {transform_indices = @transform_1, window_bounds = array<i64: 4, 160>}, {pipeline_mode = #tpu.pipeline_mode<synchronous>, transform_indices = @transform_2, window_bounds = array<i64: 256, 512>}, {pipeline_mode = #tpu.pipeline_mode<synchronous>, transform_indices = @transform_3, window_bounds = array<i64: 1, 512>}, {pipeline_mode = #tpu.pipeline_mode<synchronous>, transform_indices = @transform_4, window_bounds = array<i64: 160, 512>}, {pipeline_mode = #tpu.pipeline_mode<synchronous>, transform_indices = @transform_5, window_bounds = array<i64: 1, 512>}, {pipeline_mode = #tpu.pipeline_mode<synchronous>, transform_indices = @transform_6, window_bounds = array<i64: 512, 128>}, {pipeline_mode = #tpu.pipeline_mode<synchronous>, transform_indices = @transform_7, window_bounds = array<i64: 512, 128>}, {pipeline_mode = #tpu.pipeline_mode<synchronous>, transform_indices = @transform_8, window_bounds = array<i64: 1, 128>}, {pipeline_mode = #tpu.pipeline_mode<synchronous>, transform_indices = @transform_9, window_bounds = array<i64: 128, 64>}, {pipeline_mode = #tpu.pipeline_mode<synchronous>, transform_indices = @transform_10, window_bounds = array<i64: 1, 64>}, {pipeline_mode = #tpu.pipeline_mode<synchronous>, transform_indices = @transform_11, window_bounds = array<i64: 64, 16>}, {pipeline_mode = #tpu.pipeline_mode<synchronous>, transform_indices = @transform_12, window_bounds = array<i64: 1, 16>}, {transform_indices = @transform_13, window_bounds = array<i64: 4, 16>}]} {
    %c0 = arith.constant 0 : index
    %c0_0 = arith.constant 0 : index
    %0 = vector.load %arg1[%c0, %c0_0] : memref<4x256xf32, #tpu.memory_space<vmem>>, vector<4x256xf32>
    %1 = arith.truncf %0 : vector<4x256xf32> to vector<4x256xbf16>
    %c0_1 = arith.constant 0 : index
    %c0_2 = arith.constant 0 : index
    %2 = vector.load %arg2[%c0_1, %c0_2] : memref<4x160xf32, #tpu.memory_space<vmem>>, vector<4x160xf32>
    %3 = arith.truncf %2 : vector<4x160xf32> to vector<4x160xbf16>
    %c0_3 = arith.constant 0 : index
    %c0_4 = arith.constant 0 : index
    %4 = vector.load %arg3[%c0_3, %c0_4] : memref<256x512xbf16, #tpu.memory_space<vmem>>, vector<256x512xbf16>
    %cst = arith.constant dense<0.000000e+00> : vector<4x512xf32>
    %5 = tpu.matmul %1, %4, %cst {dimension_numbers = #tpu.dot_dimension_numbers<[1], [0], [0], [1], [0, 0, 1, 1], [], []>} : vector<4x256xbf16>, vector<256x512xbf16>, vector<4x512xf32> -> vector<4x512xf32>
    %c0_5 = arith.constant 0 : index
    %c0_6 = arith.constant 0 : index
    %6 = vector.load %arg4[%c0_5, %c0_6] : memref<1x512xf32, #tpu.memory_space<vmem>>, vector<1x512xf32>
    %7 = vector.broadcast %6 : vector<1x512xf32> to vector<4x512xf32>
    %8 = arith.addf %5, %7 : vector<4x512xf32>
    %cst_7 = arith.constant 0.000000e+00 : f32
    %9 = vector.broadcast %cst_7 : f32 to vector<4x512xf32>
    %10 = arith.maximumf %8, %9 : vector<4x512xf32>
    %11 = arith.truncf %10 : vector<4x512xf32> to vector<4x512xbf16>
    %c0_8 = arith.constant 0 : index
    %c0_9 = arith.constant 0 : index
    %12 = vector.load %arg5[%c0_8, %c0_9] : memref<160x512xbf16, #tpu.memory_space<vmem>>, vector<160x512xbf16>
    %cst_10 = arith.constant dense<0.000000e+00> : vector<4x512xf32>
    %13 = tpu.matmul %3, %12, %cst_10 {dimension_numbers = #tpu.dot_dimension_numbers<[1], [0], [0], [1], [0, 0, 1, 1], [], []>} : vector<4x160xbf16>, vector<160x512xbf16>, vector<4x512xf32> -> vector<4x512xf32>
    %c0_11 = arith.constant 0 : index
    %c0_12 = arith.constant 0 : index
    %14 = vector.load %arg6[%c0_11, %c0_12] : memref<1x512xf32, #tpu.memory_space<vmem>>, vector<1x512xf32>
    %15 = vector.broadcast %14 : vector<1x512xf32> to vector<4x512xf32>
    %16 = arith.addf %13, %15 : vector<4x512xf32>
    %cst_13 = arith.constant 0.000000e+00 : f32
    %17 = vector.broadcast %cst_13 : f32 to vector<4x512xf32>
    %18 = arith.maximumf %16, %17 : vector<4x512xf32>
    %19 = arith.truncf %18 : vector<4x512xf32> to vector<4x512xbf16>
    %c0_14 = arith.constant 0 : index
    %c0_15 = arith.constant 0 : index
    %20 = vector.load %arg7[%c0_14, %c0_15] : memref<512x128xbf16, #tpu.memory_space<vmem>>, vector<512x128xbf16>
    %cst_16 = arith.constant dense<0.000000e+00> : vector<4x128xf32>
    %21 = tpu.matmul %11, %20, %cst_16 {dimension_numbers = #tpu.dot_dimension_numbers<[1], [0], [0], [1], [0, 0, 1, 1], [], []>} : vector<4x512xbf16>, vector<512x128xbf16>, vector<4x128xf32> -> vector<4x128xf32>
    %c0_17 = arith.constant 0 : index
    %c0_18 = arith.constant 0 : index
    %22 = vector.load %arg8[%c0_17, %c0_18] : memref<512x128xbf16, #tpu.memory_space<vmem>>, vector<512x128xbf16>
    %cst_19 = arith.constant dense<0.000000e+00> : vector<4x128xf32>
    %23 = tpu.matmul %19, %22, %cst_19 {dimension_numbers = #tpu.dot_dimension_numbers<[1], [0], [0], [1], [0, 0, 1, 1], [], []>} : vector<4x512xbf16>, vector<512x128xbf16>, vector<4x128xf32> -> vector<4x128xf32>
    %24 = arith.addf %21, %23 : vector<4x128xf32>
    %c0_20 = arith.constant 0 : index
    %c0_21 = arith.constant 0 : index
    %25 = vector.load %arg9[%c0_20, %c0_21] : memref<1x128xf32, #tpu.memory_space<vmem>>, vector<1x128xf32>
    %26 = vector.broadcast %25 : vector<1x128xf32> to vector<4x128xf32>
    %27 = arith.addf %24, %26 : vector<4x128xf32>
    %cst_22 = arith.constant 0.000000e+00 : f32
    %28 = vector.broadcast %cst_22 : f32 to vector<4x128xf32>
    %29 = arith.maximumf %27, %28 : vector<4x128xf32>
    %30 = arith.truncf %29 : vector<4x128xf32> to vector<4x128xbf16>
    %c0_23 = arith.constant 0 : index
    %c0_24 = arith.constant 0 : index
    %31 = vector.load %arg10[%c0_23, %c0_24] : memref<128x64xbf16, #tpu.memory_space<vmem>>, vector<128x64xbf16>
    %cst_25 = arith.constant dense<0.000000e+00> : vector<4x64xf32>
    %32 = tpu.matmul %30, %31, %cst_25 {dimension_numbers = #tpu.dot_dimension_numbers<[1], [0], [0], [1], [0, 0, 1, 1], [], []>} : vector<4x128xbf16>, vector<128x64xbf16>, vector<4x64xf32> -> vector<4x64xf32>
    %c0_26 = arith.constant 0 : index
    %c0_27 = arith.constant 0 : index
    %33 = vector.load %arg11[%c0_26, %c0_27] : memref<1x64xf32, #tpu.memory_space<vmem>>, vector<1x64xf32>
    %34 = vector.broadcast %33 : vector<1x64xf32> to vector<4x64xf32>
    %35 = arith.addf %32, %34 : vector<4x64xf32>
    %cst_28 = arith.constant 0.000000e+00 : f32
    %36 = vector.broadcast %cst_28 : f32 to vector<4x64xf32>
    %37 = arith.maximumf %35, %36 : vector<4x64xf32>
    %38 = arith.truncf %37 : vector<4x64xf32> to vector<4x64xbf16>
    %c0_29 = arith.constant 0 : index
    %c0_30 = arith.constant 0 : index
    %39 = vector.load %arg12[%c0_29, %c0_30] : memref<64x16xbf16, #tpu.memory_space<vmem>>, vector<64x16xbf16>
    %cst_31 = arith.constant dense<0.000000e+00> : vector<4x16xf32>
    %40 = tpu.matmul %38, %39, %cst_31 {dimension_numbers = #tpu.dot_dimension_numbers<[1], [0], [0], [1], [0, 0, 1, 1], [], []>} : vector<4x64xbf16>, vector<64x16xbf16>, vector<4x16xf32> -> vector<4x16xf32>
    %c0_32 = arith.constant 0 : index
    %c0_33 = arith.constant 0 : index
    %41 = vector.load %arg13[%c0_32, %c0_33] : memref<1x16xf32, #tpu.memory_space<vmem>>, vector<1x16xf32>
    %42 = vector.broadcast %41 : vector<1x16xf32> to vector<4x16xf32>
    %43 = arith.addf %40, %42 : vector<4x16xf32>
    %c0_34 = arith.constant 0 : index
    %c0_35 = arith.constant 0 : index
    %44 = vector.load %arg14[%c0_34, %c0_35] : memref<4x16xf32, #tpu.memory_space<vmem>>, vector<4x16xf32>
    tpu.vector_store %arg14[%c0_34, %c0_35], %43 {strides = array<i32>} : memref<4x16xf32, #tpu.memory_space<vmem>>, vector<4x16xf32>,
    return
  }
  func.func @transform_0(%arg0: i32) -> (i32, i32) {
    %c0_i32 = arith.constant 0 : i32
    %c0_i32_0 = arith.constant 0 : i32
    return %arg0, %c0_i32 : i32, i32
  }
  func.func @transform_1(%arg0: i32) -> (i32, i32) {
    %c0_i32 = arith.constant 0 : i32
    %c0_i32_0 = arith.constant 0 : i32
    return %arg0, %c0_i32 : i32, i32
  }
  func.func @transform_2(%arg0: i32) -> (i32, i32) {
    %c0_i32 = arith.constant 0 : i32
    %c0_i32_0 = arith.constant 0 : i32
    %c0_i32_1 = arith.constant 0 : i32
    return %c0_i32, %c0_i32_0 : i32, i32
  }
  func.func @transform_3(%arg0: i32) -> (i32, i32) {
    %c0_i32 = arith.constant 0 : i32
    %c0_i32_0 = arith.constant 0 : i32
    %c0_i32_1 = arith.constant 0 : i32
    return %c0_i32, %c0_i32_0 : i32, i32
  }
  func.func @transform_4(%arg0: i32) -> (i32, i32) {
    %c0_i32 = arith.constant 0 : i32
    %c0_i32_0 = arith.constant 0 : i32
    %c0_i32_1 = arith.constant 0 : i32
    return %c0_i32, %c0_i32_0 : i32, i32
  }
  func.func @transform_5(%arg0: i32) -> (i32, i32) {
    %c0_i32 = arith.constant 0 : i32
    %c0_i32_0 = arith.constant 0 : i32
    %c0_i32_1 = arith.constant 0 : i32
    return %c0_i32, %c0_i32_0 : i32, i32
  }
  func.func @transform_6(%arg0: i32) -> (i32, i32) {
    %c0_i32 = arith.constant 0 : i32
    %c0_i32_0 = arith.constant 0 : i32
    %c0_i32_1 = arith.constant 0 : i32
    return %c0_i32, %c0_i32_0 : i32, i32
  }
  func.func @transform_7(%arg0: i32) -> (i32, i32) {
    %c0_i32 = arith.constant 0 : i32
    %c0_i32_0 = arith.constant 0 : i32
    %c0_i32_1 = arith.constant 0 : i32
    return %c0_i32, %c0_i32_0 : i32, i32
  }
  func.func @transform_8(%arg0: i32) -> (i32, i32) {
    %c0_i32 = arith.constant 0 : i32
    %c0_i32_0 = arith.constant 0 : i32
    %c0_i32_1 = arith.constant 0 : i32
    return %c0_i32, %c0_i32_0 : i32, i32
  }
  func.func @transform_9(%arg0: i32) -> (i32, i32) {
    %c0_i32 = arith.constant 0 : i32
    %c0_i32_0 = arith.constant 0 : i32
    %c0_i32_1 = arith.constant 0 : i32
    return %c0_i32, %c0_i32_0 : i32, i32
  }
  func.func @transform_10(%arg0: i32) -> (i32, i32) {
    %c0_i32 = arith.constant 0 : i32
    %c0_i32_0 = arith.constant 0 : i32
    %c0_i32_1 = arith.constant 0 : i32
    return %c0_i32, %c0_i32_0 : i32, i32
  }
  func.func @transform_11(%arg0: i32) -> (i32, i32) {
    %c0_i32 = arith.constant 0 : i32
    %c0_i32_0 = arith.constant 0 : i32
    %c0_i32_1 = arith.constant 0 : i32
    return %c0_i32, %c0_i32_0 : i32, i32
  }
  func.func @transform_12(%arg0: i32) -> (i32, i32) {
    %c0_i32 = arith.constant 0 : i32
    %c0_i32_0 = arith.constant 0 : i32
    %c0_i32_1 = arith.constant 0 : i32
    return %c0_i32, %c0_i32_0 : i32, i32
  }
  func.func @transform_13(%arg0: i32) -> (i32, i32) {
    %c0_i32 = arith.constant 0 : i32
    %c0_i32_0 = arith.constant 0 : i32
    return %arg0, %c0_i32 : i32, i32
  }
}

</mosaic_0001>

<llo_original>
// kernel: tpu_custom_call.1
$region0: #{tpu_custom_call.1}
  #allocation0 [shape = 'u32[]', space=smem, size = 0x4, offset = 0x4, fixed_abs, tag = 'smem constant byte address 0x4 - core index']
  #allocation1 [shape = 'u32[144,128]{1,0:T(1,128)}', space=vmem, size = 0x12000, scoped, tag = 'internal scratch']
  %s0 = inlined_call_operand.vmem [shape: f32[4,256], index: 0, kind: input, shape index: {}]
  %s1 = inlined_call_operand.vmem [shape: f32[4,160], index: 1, kind: input, shape index: {}]
  %s2 = inlined_call_operand.hbm [shape: bf16[256,512], index: 2, kind: input, shape index: {}]
  %s3 = inlined_call_operand.vmem [shape: f32[1,512], index: 3, kind: input, shape index: {}]
  %s4 = inlined_call_operand.hbm [shape: bf16[160,512], index: 4, kind: input, shape index: {}]
  %s5 = inlined_call_operand.vmem [shape: f32[1,512], index: 5, kind: input, shape index: {}]
  %s6 = inlined_call_operand.hbm [shape: bf16[512,128], index: 6, kind: input, shape index: {}]
  %s7 = inlined_call_operand.hbm [shape: bf16[512,128], index: 7, kind: input, shape index: {}]
  %s8 = inlined_call_operand.vmem [shape: f32[1,128], index: 8, kind: input, shape index: {}]
  %s9 = inlined_call_operand.vmem [shape: bf16[128,64], index: 9, kind: input, shape index: {}]
  %s10 = inlined_call_operand.vmem [shape: f32[1,64], index: 10, kind: input, shape index: {}]
  %s11 = inlined_call_operand.vmem [shape: bf16[64,16], index: 11, kind: input, shape index: {}]
  %s12 = inlined_call_operand.vmem [shape: f32[1,16], index: 12, kind: input, shape index: {}]
  %s13 = inlined_call_operand.hbm [shape: f32[4,16], index: 13, kind: output, shape index: {}]
  %s14 = sld [smem:[#allocation0]]
  $region78: #{tpu_custom_call.1} parent=0
    _
  %s16 = ssub.s32 1, %s14
  %s17 = scalar_select 0, %s16, %s14
  $region1: #{tpu_custom_call.1} parent=0
    #allocation2 [shape = 'u8[262144]{0}', space=vmem, size = 0x40000, scoped, tag = 'input window, operand 2, single buffered']
    #allocation3 [shape = 's32[1]{0}', space=sflag, size = 0x4, scoped, tag = 'scoped memory for tpu_custom_call.1']
    #allocation4 [shape = 's32[1]{0}', space=sflag, size = 0x4, scoped, tag = 'scoped memory for tpu_custom_call.1']
    #allocation5 [shape = 'u8[163840]{0}', space=vmem, size = 0x28000, scoped, tag = 'input window, operand 4, single buffered']
    #allocation6 [shape = 's32[1]{0}', space=sflag, size = 0x4, scoped, tag = 'scoped memory for tpu_custom_call.1']
    #allocation7 [shape = 'u8[131072]{0}', space=vmem, size = 0x20000, scoped, tag = 'input window, operand 6, single buffered']
    #allocation8 [shape = 'u8[131072]{0}', space=vmem, size = 0x20000, scoped, tag = 'input window, operand 7, single buffered']
    #allocation9 [shape = 's32[1]{0}', space=sflag, size = 0x4, scoped, tag = 'scoped memory for tpu_custom_call.1']
    #allocation10 [shape = 'u8[2048]{0}', space=vmem, size = 0x800, scoped, tag = 'output window, operand 0, single buffered']
    %18 = vsyncpa [#allocation3], 0
    %19 = vsyncpa [#allocation6], 0
    %20 = vsyncpa [#allocation9], 0
    %21 = vsyncpa [#allocation4], 0
    // Predicated region
    $region2: #{tpu_custom_call.1} parent=1 // pred_check
      _
    $region3: #{tpu_custom_call.1} parent=1 // pred_check_branch
      %23 = sbr.rel (0) target = $region5
    $region4: #{tpu_custom_call.1} parent=1 // pred_region
      _
    $region5: #{tpu_custom_call.1} parent=1 // pred_fallthru
      _
    // Predicated region
    $region6: #{tpu_custom_call.1} parent=1 // pred_check
      _
    $region7: #{tpu_custom_call.1} parent=1 // pred_check_branch
      %25 = sbr.rel (0) target = $region9
    $region8: #{tpu_custom_call.1} parent=1 // pred_region
      _
    $region9: #{tpu_custom_call.1} parent=1 // pred_fallthru
      _
    // Predicated region
    $region10: #{tpu_custom_call.1} parent=1 // pred_check
      _
    $region11: #{tpu_custom_call.1} parent=1 // pred_check_branch
      %27 = sbr.rel (0) target = $region13
    $region12: #{tpu_custom_call.1} parent=1 // pred_region
      %s29 = ssub.s32 8192, 8192
      %30 = vsyncadd [#allocation3], %s29
      %s31 = sshll.u32 [#allocation2], 4
      %s32 = int_to_ptr.vmem [resolvable:$true] %s31
      %37 = dma.hbm_to_vmem [thread:$0]  %s2, 8192, %s32, [#allocation3], 256, 256, 16
    $region13: #{tpu_custom_call.1} parent=1 // pred_fallthru
      _
    // Predicated region
    $region14: #{tpu_custom_call.1} parent=1 // pred_check
      _
    $region15: #{tpu_custom_call.1} parent=1 // pred_check_branch
      %39 = sbr.rel (0) target = $region17
    $region16: #{tpu_custom_call.1} parent=1 // pred_region
      _
    $region17: #{tpu_custom_call.1} parent=1 // pred_fallthru
      _
    // Predicated region
    $region18: #{tpu_custom_call.1} parent=1 // pred_check
      _
    $region19: #{tpu_custom_call.1} parent=1 // pred_check_branch
      %41 = sbr.rel (0) target = $region21
    $region20: #{tpu_custom_call.1} parent=1 // pred_region
      %s43 = ssub.s32 5120, 5120
      %44 = vsyncadd [#allocation6], %s43
      %s45 = sshll.u32 [#allocation5], 4
      %s46 = int_to_ptr.vmem [resolvable:$true] %s45
      %51 = dma.hbm_to_vmem [thread:$0]  %s4, 5120, %s46, [#allocation6], 256, 256, 16
    $region21: #{tpu_custom_call.1} parent=1 // pred_fallthru
      _
    // Predicated region
    $region22: #{tpu_custom_call.1} parent=1 // pred_check
      _
    $region23: #{tpu_custom_call.1} parent=1 // pred_check_branch
      %53 = sbr.rel (0) target = $region25
    $region24: #{tpu_custom_call.1} parent=1 // pred_region
      _
    $region25: #{tpu_custom_call.1} parent=1 // pred_fallthru
      _
    // Predicated region
    $region26: #{tpu_custom_call.1} parent=1 // pred_check
      _
    $region27: #{tpu_custom_call.1} parent=1 // pred_check_branch
      %55 = sbr.rel (0) target = $region29
    $region28: #{tpu_custom_call.1} parent=1 // pred_region
      %s57 = ssub.s32 4096, 4096
      %58 = vsyncadd [#allocation6], %s57
      %s59 = sshll.u32 [#allocation7], 4
      %s60 = int_to_ptr.vmem [resolvable:$true] %s59
      %65 = dma.hbm_to_vmem [thread:$0]  %s6, 4096, %s60, [#allocation6], 64, 64, 4
    $region29: #{tpu_custom_call.1} parent=1 // pred_fallthru
      _
    // Predicated region
    $region30: #{tpu_custom_call.1} parent=1 // pred_check
      _
    $region31: #{tpu_custom_call.1} parent=1 // pred_check_branch
      %67 = sbr.rel (0) target = $region33
    $region32: #{tpu_custom_call.1} parent=1 // pred_region
      %s69 = ssub.s32 4096, 4096
      %70 = vsyncadd [#allocation9], %s69
      %s71 = sshll.u32 [#allocation8], 4
      %s72 = int_to_ptr.vmem [resolvable:$true] %s71
      %77 = dma.hbm_to_vmem [thread:$0]  %s7, 4096, %s72, [#allocation9], 64, 64, 4
    $region33: #{tpu_custom_call.1} parent=1 // pred_fallthru
      _
    // Predicated region
    $region34: #{tpu_custom_call.1} parent=1 // pred_check
      _
    $region35: #{tpu_custom_call.1} parent=1 // pred_check_branch
      %79 = sbr.rel (0) target = $region37
    $region36: #{tpu_custom_call.1} parent=1 // pred_region
      _
    $region37: #{tpu_custom_call.1} parent=1 // pred_fallthru
      _
    // Predicated region
    $region38: #{tpu_custom_call.1} parent=1 // pred_check
      _
    $region39: #{tpu_custom_call.1} parent=1 // pred_check_branch
      %81 = sbr.rel (0) target = $region41
    $region40: #{tpu_custom_call.1} parent=1 // pred_region
      _
    $region41: #{tpu_custom_call.1} parent=1 // pred_fallthru
      _
    // Predicated region
    $region42: #{tpu_custom_call.1} parent=1 // pred_check
      _
    $region43: #{tpu_custom_call.1} parent=1 // pred_check_branch
      %83 = sbr.rel (0) target = $region45
    $region44: #{tpu_custom_call.1} parent=1 // pred_region
      _
    $region45: #{tpu_custom_call.1} parent=1 // pred_fallthru
      _
    // Predicated region
    $region46: #{tpu_custom_call.1} parent=1 // pred_check
      _
    $region47: #{tpu_custom_call.1} parent=1 // pred_check_branch
      %85 = sbr.rel (0) target = $region49
    $region48: #{tpu_custom_call.1} parent=1 // pred_region
      _
    $region49: #{tpu_custom_call.1} parent=1 // pred_fallthru
      _
    // Predicated region
    $region50: #{tpu_custom_call.1} parent=1 // pred_check
      _
    $region51: #{tpu_custom_call.1} parent=1 // pred_check_branch
      %87 = sbr.rel (0) target = $region53
    $region52: #{tpu_custom_call.1} parent=1 // pred_region
      _
    $region53: #{tpu_custom_call.1} parent=1 // pred_fallthru
      _
    // Predicated region
    $region54: #{tpu_custom_call.1} parent=1 // pred_check
      _
    $region55: #{tpu_custom_call.1} parent=1 // pred_check_branch
      %89 = sbr.rel (0) target = $region57
    $region56: #{tpu_custom_call.1} parent=1 // pred_region
      %90 = dma.done [#allocation3], 8192
    $region57: #{tpu_custom_call.1} parent=1 // pred_fallthru
      _
    // Predicated region
    $region58: #{tpu_custom_call.1} parent=1 // pred_check
      _
    $region59: #{tpu_custom_call.1} parent=1 // pred_check_branch
      %92 = sbr.rel (0) target = $region61
    $region60: #{tpu_custom_call.1} parent=1 // pred_region
      %93 = dma.done [#allocation6], 5120
    $region61: #{tpu_custom_call.1} parent=1 // pred_fallthru
      _
    // Predicated region
    $region62: #{tpu_custom_call.1} parent=1 // pred_check
      _
    $region63: #{tpu_custom_call.1} parent=1 // pred_check_branch
      %95 = sbr.rel (0) target = $region65
    $region64: #{tpu_custom_call.1} parent=1 // pred_region
      %96 = dma.done [#allocation6], 4096
    $region65: #{tpu_custom_call.1} parent=1 // pred_fallthru
      _
    // Predicated region
    $region66: #{tpu_custom_call.1} parent=1 // pred_check
      _
    $region67: #{tpu_custom_call.1} parent=1 // pred_check_branch
      %98 = sbr.rel (0) target = $region69
    $region68: #{tpu_custom_call.1} parent=1 // pred_region
      %99 = dma.done [#allocation9], 4096
    $region69: #{tpu_custom_call.1} parent=1 // pred_fallthru
      _
    %v101 = vld [vmem:[%s0] sm:$0xff]
    %v103 = vcombine.high %v101, %v101
    %v105 = vpack.c.bf16 %v101, %v101
    %v106 = vpack.c.bf16 %v103, %v103
    %v107 = vld [vmem:[%s1] sm:$0xff]
    %v109 = vcombine.high %v107, %v107
    %v111 = vpack.c.bf16 %v107, %v107
    %v112 = vpack.c.bf16 %v109, %v109
    %v113 = vld [vmem:[#allocation2] sm:$0xff]
    %v114 = vld [vmem:[#allocation2 + $0x8] sm:$0xff]
    %v115 = vld [vmem:[#allocation2 + $0x10] sm:$0xff]
    %v116 = vld [vmem:[#allocation2 + $0x18] sm:$0xff]
    %v117 = vld [vmem:[#allocation2 + $0x20] sm:$0xff]
    %v118 = vld [vmem:[#allocation2 + $0x28] sm:$0xff]
    %v119 = vld [vmem:[#allocation2 + $0x30] sm:$0xff]
    %v120 = vld [vmem:[#allocation2 + $0x38] sm:$0xff]
    %v121 = vld [vmem:[#allocation2 + $0x40] sm:$0xff]
    %v122 = vld [vmem:[#allocation2 + $0x48] sm:$0xff]
    %v123 = vld [vmem:[#allocation2 + $0x50] sm:$0xff]
    %v124 = vld [vmem:[#allocation2 + $0x58] sm:$0xff]
    %v125 = vld [vmem:[#allocation2 + $0x60] sm:$0xff]
    %v126 = vld [vmem:[#allocation2 + $0x68] sm:$0xff]
    %v127 = vld [vmem:[#allocation2 + $0x70] sm:$0xff]
    %v128 = vld [vmem:[#allocation2 + $0x78] sm:$0xff]
    %v129 = vld [vmem:[#allocation2 + $0x80] sm:$0xff]
    %v130 = vld [vmem:[#allocation2 + $0x88] sm:$0xff]
    %v131 = vld [vmem:[#allocation2 + $0x90] sm:$0xff]
    %v132 = vld [vmem:[#allocation2 + $0x98] sm:$0xff]
    %v133 = vld [vmem:[#allocation2 + $0xa0] sm:$0xff]
    %v134 = vld [vmem:[#allocation2 + $0xa8] sm:$0xff]
    %v135 = vld [vmem:[#allocation2 + $0xb0] sm:$0xff]
    %v136 = vld [vmem:[#allocation2 + $0xb8] sm:$0xff]
    %v137 = vld [vmem:[#allocation2 + $0xc0] sm:$0xff]
    %v138 = vld [vmem:[#allocation2 + $0xc8] sm:$0xff]
    %v139 = vld [vmem:[#allocation2 + $0xd0] sm:$0xff]
    %v140 = vld [vmem:[#allocation2 + $0xd8] sm:$0xff]
    %v141 = vld [vmem:[#allocation2 + $0xe0] sm:$0xff]
    %v142 = vld [vmem:[#allocation2 + $0xe8] sm:$0xff]
    %v143 = vld [vmem:[#allocation2 + $0xf0] sm:$0xff]
    %v144 = vld [vmem:[#allocation2 + $0xf8] sm:$0xff]
    %v145 = vld [vmem:[#allocation2 + $0x100] sm:$0xff]
    %v146 = vld [vmem:[#allocation2 + $0x108] sm:$0xff]
    %v147 = vld [vmem:[#allocation2 + $0x110] sm:$0xff]
    %v148 = vld [vmem:[#allocation2 + $0x118] sm:$0xff]
    %v149 = vld [vmem:[#allocation2 + $0x120] sm:$0xff]
    %v150 = vld [vmem:[#allocation2 + $0x128] sm:$0xff]
    %v151 = vld [vmem:[#allocation2 + $0x130] sm:$0xff]
    %v152 = vld [vmem:[#allocation2 + $0x138] sm:$0xff]
    %v153 = vld [vmem:[#allocation2 + $0x140] sm:$0xff]
    %v154 = vld [vmem:[#allocation2 + $0x148] sm:$0xff]
    %v155 = vld [vmem:[#allocation2 + $0x150] sm:$0xff]
    %v156 = vld [vmem:[#allocation2 + $0x158] sm:$0xff]
    %v157 = vld [vmem:[#allocation2 + $0x160] sm:$0xff]
    %v158 = vld [vmem:[#allocation2 + $0x168] sm:$0xff]
    %v159 = vld [vmem:[#allocation2 + $0x170] sm:$0xff]
    %v160 = vld [vmem:[#allocation2 + $0x178] sm:$0xff]
    %v161 = vld [vmem:[#allocation2 + $0x180] sm:$0xff]
    %v162 = vld [vmem:[#allocation2 + $0x188] sm:$0xff]
    %v163 = vld [vmem:[#allocation2 + $0x190] sm:$0xff]
    %v164 = vld [vmem:[#allocation2 + $0x198] sm:$0xff]
    %v165 = vld [vmem:[#allocation2 + $0x1a0] sm:$0xff]
    %v166 = vld [vmem:[#allocation2 + $0x1a8] sm:$0xff]
    %v167 = vld [vmem:[#allocation2 + $0x1b0] sm:$0xff]
    %v168 = vld [vmem:[#allocation2 + $0x1b8] sm:$0xff]
    %v169 = vld [vmem:[#allocation2 + $0x1c0] sm:$0xff]
    %v170 = vld [vmem:[#allocation2 + $0x1c8] sm:$0xff]
    %v171 = vld [vmem:[#allocation2 + $0x1d0] sm:$0xff]
    %v172 = vld [vmem:[#allocation2 + $0x1d8] sm:$0xff]
    %v173 = vld [vmem:[#allocation2 + $0x1e0] sm:$0xff]
    %v174 = vld [vmem:[#allocation2 + $0x1e8] sm:$0xff]
    %v175 = vld [vmem:[#allocation2 + $0x1f0] sm:$0xff]
    %v176 = vld [vmem:[#allocation2 + $0x1f8] sm:$0xff]
    %v177 = vld [vmem:[%s3] sm:$0xf]
    %v179 = vlaneseq
    %v180 = vshrl.u32 %v179, 7
    %v181 = vsub.s32 0, %v180
    %v182 = vrot.slane %v177, %v181
    %v183 = vlaneseq
    %v184 = vshrl.u32 %v183, 7
    %v185 = vsub.s32 1, %v184
    %v186 = vrot.slane %v177, %v185
    %v187 = vlaneseq
    %v188 = vshrl.u32 %v187, 7
    %v189 = vsub.s32 2, %v188
    %v190 = vrot.slane %v177, %v189
    %v191 = vlaneseq
    %v192 = vshrl.u32 %v191, 7
    %v193 = vsub.s32 3, %v192
    %v194 = vrot.slane %v177, %v193
    %v263 = vunpack.c.l.b16 %v113
    %v264 = vunpack.c.h.b16 %v113
    %v265 = vunpack.c.l.b16 %v114
    %v266 = vunpack.c.h.b16 %v114
    %v267 = vunpack.c.l.b16 %v115
    %v268 = vunpack.c.h.b16 %v115
    %v269 = vunpack.c.l.b16 %v116
    %v270 = vunpack.c.h.b16 %v116
    %v271 = vunpack.c.l.b16 %v117
    %v272 = vunpack.c.h.b16 %v117
    %v273 = vunpack.c.l.b16 %v118
    %v274 = vunpack.c.h.b16 %v118
    %v275 = vunpack.c.l.b16 %v119
    %v276 = vunpack.c.h.b16 %v119
    %v277 = vunpack.c.l.b16 %v120
    %v278 = vunpack.c.h.b16 %v120
    %v279 = vunpack.c.l.b16 %v121
    %v280 = vunpack.c.h.b16 %v121
    %v281 = vunpack.c.l.b16 %v122
    %v282 = vunpack.c.h.b16 %v122
    %v283 = vunpack.c.l.b16 %v123
    %v284 = vunpack.c.h.b16 %v123
    %v285 = vunpack.c.l.b16 %v124
    %v286 = vunpack.c.h.b16 %v124
    %v287 = vunpack.c.l.b16 %v125
    %v288 = vunpack.c.h.b16 %v125
    %v289 = vunpack.c.l.b16 %v126
    %v290 = vunpack.c.h.b16 %v126
    %v291 = vunpack.c.l.b16 %v127
    %v292 = vunpack.c.h.b16 %v127
    %v293 = vunpack.c.l.b16 %v128
    %v294 = vunpack.c.h.b16 %v128
    %v295 = vunpack.c.l.b16 %v129
    %v296 = vunpack.c.h.b16 %v129
    %v297 = vunpack.c.l.b16 %v130
    %v298 = vunpack.c.h.b16 %v130
    %v299 = vunpack.c.l.b16 %v131
    %v300 = vunpack.c.h.b16 %v131
    %v301 = vunpack.c.l.b16 %v132
    %v302 = vunpack.c.h.b16 %v132
    %v303 = vunpack.c.l.b16 %v133
    %v304 = vunpack.c.h.b16 %v133
    %v305 = vunpack.c.l.b16 %v134
    %v306 = vunpack.c.h.b16 %v134
    %v307 = vunpack.c.l.b16 %v135
    %v308 = vunpack.c.h.b16 %v135
    %v309 = vunpack.c.l.b16 %v136
    %v310 = vunpack.c.h.b16 %v136
    %v311 = vunpack.c.l.b16 %v137
    %v312 = vunpack.c.h.b16 %v137
    %v313 = vunpack.c.l.b16 %v138
    %v314 = vunpack.c.h.b16 %v138
    %v315 = vunpack.c.l.b16 %v139
    %v316 = vunpack.c.h.b16 %v139
    %v317 = vunpack.c.l.b16 %v140
    %v318 = vunpack.c.h.b16 %v140
    %v319 = vunpack.c.l.b16 %v141
    %v320 = vunpack.c.h.b16 %v141
    %v321 = vunpack.c.l.b16 %v142
    %v322 = vunpack.c.h.b16 %v142
    %v323 = vunpack.c.l.b16 %v143
    %v324 = vunpack.c.h.b16 %v143
    %v325 = vunpack.c.l.b16 %v144
    %v326 = vunpack.c.h.b16 %v144
    %v327 = vunpack.c.l.b16 %v145
    %v328 = vunpack.c.h.b16 %v145
    %v329 = vunpack.c.l.b16 %v146
    %v330 = vunpack.c.h.b16 %v146
    %v331 = vunpack.c.l.b16 %v147
    %v332 = vunpack.c.h.b16 %v147
    %v333 = vunpack.c.l.b16 %v148
    %v334 = vunpack.c.h.b16 %v148
    %v335 = vunpack.c.l.b16 %v149
    %v336 = vunpack.c.h.b16 %v149
    %v337 = vunpack.c.l.b16 %v150
    %v338 = vunpack.c.h.b16 %v150
    %v339 = vunpack.c.l.b16 %v151
    %v340 = vunpack.c.h.b16 %v151
    %v341 = vunpack.c.l.b16 %v152
    %v342 = vunpack.c.h.b16 %v152
    %v343 = vunpack.c.l.b16 %v153
    %v344 = vunpack.c.h.b16 %v153
    %v345 = vunpack.c.l.b16 %v154
    %v346 = vunpack.c.h.b16 %v154
    %v347 = vunpack.c.l.b16 %v155
    %v348 = vunpack.c.h.b16 %v155
    %v349 = vunpack.c.l.b16 %v156
    %v350 = vunpack.c.h.b16 %v156
    %v351 = vunpack.c.l.b16 %v157
    %v352 = vunpack.c.h.b16 %v157
    %v353 = vunpack.c.l.b16 %v158
    %v354 = vunpack.c.h.b16 %v158
    %v355 = vunpack.c.l.b16 %v159
    %v356 = vunpack.c.h.b16 %v159
    %v357 = vunpack.c.l.b16 %v160
    %v358 = vunpack.c.h.b16 %v160
    %v359 = vunpack.c.l.b16 %v161
    %v360 = vunpack.c.h.b16 %v161
    %v361 = vunpack.c.l.b16 %v162
    %v362 = vunpack.c.h.b16 %v162
    %v363 = vunpack.c.l.b16 %v163
    %v364 = vunpack.c.h.b16 %v163
    %v365 = vunpack.c.l.b16 %v164
    %v366 = vunpack.c.h.b16 %v164
    %v367 = vunpack.c.l.b16 %v165
    %v368 = vunpack.c.h.b16 %v165
    %v369 = vunpack.c.l.b16 %v166
    %v370 = vunpack.c.h.b16 %v166
    %v371 = vunpack.c.l.b16 %v167
    %v372 = vunpack.c.h.b16 %v167
    %v373 = vunpack.c.l.b16 %v168
    %v374 = vunpack.c.h.b16 %v168
    %v375 = vunpack.c.l.b16 %v169
    %v376 = vunpack.c.h.b16 %v169
    %v377 = vunpack.c.l.b16 %v170
    %v378 = vunpack.c.h.b16 %v170
    %v379 = vunpack.c.l.b16 %v171
    %v380 = vunpack.c.h.b16 %v171
    %v381 = vunpack.c.l.b16 %v172
    %v382 = vunpack.c.h.b16 %v172
    %v383 = vunpack.c.l.b16 %v173
    %v384 = vunpack.c.h.b16 %v173
    %v385 = vunpack.c.l.b16 %v174
    %v386 = vunpack.c.h.b16 %v174
    %v387 = vunpack.c.l.b16 %v175
    %v388 = vunpack.c.h.b16 %v175
    %v389 = vunpack.c.l.b16 %v176
    %v390 = vunpack.c.h.b16 %v176
    %v391 = vpack.c.b16 %v267, %v263
    %v392 = vpack.c.b16 %v268, %v264
    %v393 = vpack.c.b16 %v269, %v265
    %v394 = vpack.c.b16 %v270, %v266
    %v395 = vpack.c.b16 %v275, %v271
    %v396 = vpack.c.b16 %v276, %v272
    %v397 = vpack.c.b16 %v277, %v273
    %v398 = vpack.c.b16 %v278, %v274
    %v399 = vpack.c.b16 %v283, %v279
    %v400 = vpack.c.b16 %v284, %v280
    %v401 = vpack.c.b16 %v285, %v281
    %v402 = vpack.c.b16 %v286, %v282
    %v403 = vpack.c.b16 %v291, %v287
    %v404 = vpack.c.b16 %v292, %v288
    %v405 = vpack.c.b16 %v293, %v289
    %v406 = vpack.c.b16 %v294, %v290
    %v407 = vpack.c.b16 %v299, %v295
    %v408 = vpack.c.b16 %v300, %v296
    %v409 = vpack.c.b16 %v301, %v297
    %v410 = vpack.c.b16 %v302, %v298
    %v411 = vpack.c.b16 %v307, %v303
    %v412 = vpack.c.b16 %v308, %v304
    %v413 = vpack.c.b16 %v309, %v305
    %v414 = vpack.c.b16 %v310, %v306
    %v415 = vpack.c.b16 %v315, %v311
    %v416 = vpack.c.b16 %v316, %v312
    %v417 = vpack.c.b16 %v317, %v313
    %v418 = vpack.c.b16 %v318, %v314
    %v419 = vpack.c.b16 %v323, %v319
    %v420 = vpack.c.b16 %v324, %v320
    %v421 = vpack.c.b16 %v325, %v321
    %v422 = vpack.c.b16 %v326, %v322
    %v423 = vpack.c.b16 %v331, %v327
    %v424 = vpack.c.b16 %v332, %v328
    %v425 = vpack.c.b16 %v333, %v329
    %v426 = vpack.c.b16 %v334, %v330
    %v427 = vpack.c.b16 %v339, %v335
    %v428 = vpack.c.b16 %v340, %v336
    %v429 = vpack.c.b16 %v341, %v337
    %v430 = vpack.c.b16 %v342, %v338
    %v431 = vpack.c.b16 %v347, %v343
    %v432 = vpack.c.b16 %v348, %v344
    %v433 = vpack.c.b16 %v349, %v345
    %v434 = vpack.c.b16 %v350, %v346
    %v435 = vpack.c.b16 %v355, %v351
    %v436 = vpack.c.b16 %v356, %v352
    %v437 = vpack.c.b16 %v357, %v353
    %v438 = vpack.c.b16 %v358, %v354
    %v439 = vpack.c.b16 %v363, %v359
    %v440 = vpack.c.b16 %v364, %v360
    %v441 = vpack.c.b16 %v365, %v361
    %v442 = vpack.c.b16 %v366, %v362
    %v443 = vpack.c.b16 %v371, %v367
    %v444 = vpack.c.b16 %v372, %v368
    %v445 = vpack.c.b16 %v373, %v369
    %v446 = vpack.c.b16 %v374, %v370
    %v447 = vpack.c.b16 %v379, %v375
    %v448 = vpack.c.b16 %v380, %v376
    %v449 = vpack.c.b16 %v381, %v377
    %v450 = vpack.c.b16 %v382, %v378
    %v451 = vpack.c.b16 %v387, %v383
    %v452 = vpack.c.b16 %v388, %v384
    %v453 = vpack.c.b16 %v389, %v385
    %v454 = vpack.c.b16 %v390, %v386
    %519 = vmatprep.subr.bf16.mxu0 %v392
    %520 = vmatpush1.bf16.msra.mxu0 %v391
    %521 = vmatprep.subr.bf16.mxu0 %v396
    %522 = vmatpush1.bf16.msra.mxu0 %v395
    %523 = vmatprep.subr.bf16.mxu0 %v400
    %524 = vmatpush1.bf16.msra.mxu0 %v399
    %525 = vmatprep.subr.bf16.mxu0 %v404
    %526 = vmatpush1.bf16.msra.mxu0 %v403
    %527 = vmatprep.subr.bf16.mxu0 %v408
    %528 = vmatpush1.bf16.msra.mxu0 %v407
    %529 = vmatprep.subr.bf16.mxu0 %v412
    %530 = vmatpush1.bf16.msra.mxu0 %v411
    %531 = vmatprep.subr.bf16.mxu0 %v416
    %532 = vmatpush1.bf16.msra.mxu0 %v415
    %533 = vmatprep.subr.bf16.mxu0 %v420
    %534 = vmatpush1.bf16.msra.mxu0 %v419
    %535 = vmatprep.subr.bf16.mxu0 %v424
    %536 = vmatpush1.bf16.msra.mxu0 %v423
    %537 = vmatprep.subr.bf16.mxu0 %v428
    %538 = vmatpush1.bf16.msra.mxu0 %v427
    %539 = vmatprep.subr.bf16.mxu0 %v432
    %540 = vmatpush1.bf16.msra.mxu0 %v431
    %541 = vmatprep.subr.bf16.mxu0 %v436
    %542 = vmatpush1.bf16.msra.mxu0 %v435
    %543 = vmatprep.subr.bf16.mxu0 %v440
    %544 = vmatpush1.bf16.msra.mxu0 %v439
    %545 = vmatprep.subr.bf16.mxu0 %v444
    %546 = vmatpush1.bf16.msra.mxu0 %v443
    %547 = vmatprep.subr.bf16.mxu0 %v448
    %548 = vmatpush1.bf16.msra.mxu0 %v447
    %549 = vmatprep.subr.bf16.mxu0 %v452
    %550 = vmatpush1.bf16.msra.mxu0 %v451
    %551 = vmatprep.mubr.bf16.mxu0 %v106
    %552 = vmatmul.mubr.bf16.gmra.mrb[0].mxu0 %v105
    %v553 = vpop.f32.mrb[0].mxu0
    %v554 = vadd.f32 %v182, %v553
    %v555 = vpop.f32.mrb[0].mxu0
    %v556 = vadd.f32 %v186, %v555
    %v557 = vpop.f32.mrb[0].mxu0
    %v558 = vpop.f32.mrb[0].mxu0
    %559 = vdwg.mxu0
    %560 = vmatprep.subr.bf16.mxu0 %v394
    %561 = vmatpush1.bf16.msra.mxu0 %v393
    %562 = vmatprep.subr.bf16.mxu0 %v398
    %563 = vmatpush1.bf16.msra.mxu0 %v397
    %564 = vmatprep.subr.bf16.mxu0 %v402
    %565 = vmatpush1.bf16.msra.mxu0 %v401
    %566 = vmatprep.subr.bf16.mxu0 %v406
    %567 = vmatpush1.bf16.msra.mxu0 %v405
    %568 = vmatprep.subr.bf16.mxu0 %v410
    %569 = vmatpush1.bf16.msra.mxu0 %v409
    %570 = vmatprep.subr.bf16.mxu0 %v414
    %571 = vmatpush1.bf16.msra.mxu0 %v413
    %572 = vmatprep.subr.bf16.mxu0 %v418
    %573 = vmatpush1.bf16.msra.mxu0 %v417
    %574 = vmatprep.subr.bf16.mxu0 %v422
    %575 = vmatpush1.bf16.msra.mxu0 %v421
    %576 = vmatprep.subr.bf16.mxu0 %v426
    %577 = vmatpush1.bf16.msra.mxu0 %v425
    %578 = vmatprep.subr.bf16.mxu0 %v430
    %579 = vmatpush1.bf16.msra.mxu0 %v429
    %580 = vmatprep.subr.bf16.mxu0 %v434
    %581 = vmatpush1.bf16.msra.mxu0 %v433
    %582 = vmatprep.subr.bf16.mxu0 %v438
    %583 = vmatpush1.bf16.msra.mxu0 %v437
    %584 = vmatprep.subr.bf16.mxu0 %v442
    %585 = vmatpush1.bf16.msra.mxu0 %v441
    %586 = vmatprep.subr.bf16.mxu0 %v446
    %587 = vmatpush1.bf16.msra.mxu0 %v445
    %588 = vmatprep.subr.bf16.mxu0 %v450
    %589 = vmatpush1.bf16.msra.mxu0 %v449
    %590 = vmatprep.subr.bf16.mxu0 %v454
    %591 = vmatpush1.bf16.msra.mxu0 %v453
    %592 = vmatprep.mubr.bf16.mxu0 %v106
    %593 = vmatmul.mubr.bf16.gmra.mrb[0].mxu0 %v105
    %v594 = vpop.f32.mrb[0].mxu0
    %v595 = vadd.f32 %v190, %v594
    %v596 = vpop.f32.mrb[0].mxu0
    %v597 = vadd.f32 %v194, %v596
    %v598 = vpop.f32.mrb[0].mxu0
    %v599 = vpop.f32.mrb[0].mxu0
    %600 = vdwg.mxu0
    %v601 = vmax.f32 %v554, 0.0
    %v602 = vmax.f32 %v556, 0.0
    %v603 = vmax.f32 %v595, 0.0
    %v604 = vmax.f32 %v597, 0.0
    %v605 = vpack.c.bf16 %v601, %v601
    %v606 = vpack.c.bf16 %v602, %v602
    %v607 = vpack.c.bf16 %v603, %v603
    %v608 = vpack.c.bf16 %v604, %v604
    %v609 = vld [vmem:[#allocation5] sm:$0xff]
    %v610 = vld [vmem:[#allocation5 + $0x8] sm:$0xff]
    %v611 = vld [vmem:[#allocation5 + $0x10] sm:$0xff]
    %v612 = vld [vmem:[#allocation5 + $0x18] sm:$0xff]
    %v613 = vld [vmem:[#allocation5 + $0x20] sm:$0xff]
    %v614 = vld [vmem:[#allocation5 + $0x28] sm:$0xff]
    %v615 = vld [vmem:[#allocation5 + $0x30] sm:$0xff]
    %v616 = vld [vmem:[#allocation5 + $0x38] sm:$0xff]
    %v617 = vld [vmem:[#allocation5 + $0x40] sm:$0xff]
    %v618 = vld [vmem:[#allocation5 + $0x48] sm:$0xff]
    %v619 = vld [vmem:[#allocation5 + $0x50] sm:$0xff]
    %v620 = vld [vmem:[#allocation5 + $0x58] sm:$0xff]
    %v621 = vld [vmem:[#allocation5 + $0x60] sm:$0xff]
    %v622 = vld [vmem:[#allocation5 + $0x68] sm:$0xff]
    %v623 = vld [vmem:[#allocation5 + $0x70] sm:$0xff]
    %v624 = vld [vmem:[#allocation5 + $0x78] sm:$0xff]
    %v625 = vld [vmem:[#allocation5 + $0x80] sm:$0xff]
    %v626 = vld [vmem:[#allocation5 + $0x88] sm:$0xff]
    %v627 = vld [vmem:[#allocation5 + $0x90] sm:$0xff]
    %v628 = vld [vmem:[#allocation5 + $0x98] sm:$0xff]
    %v629 = vld [vmem:[#allocation5 + $0xa0] sm:$0xff]
    %v630 = vld [vmem:[#allocation5 + $0xa8] sm:$0xff]
    %v631 = vld [vmem:[#allocation5 + $0xb0] sm:$0xff]
    %v632 = vld [vmem:[#allocation5 + $0xb8] sm:$0xff]
    %v633 = vld [vmem:[#allocation5 + $0xc0] sm:$0xff]
    %v634 = vld [vmem:[#allocation5 + $0xc8] sm:$0xff]
    %v635 = vld [vmem:[#allocation5 + $0xd0] sm:$0xff]
    %v636 = vld [vmem:[#allocation5 + $0xd8] sm:$0xff]
    %v637 = vld [vmem:[#allocation5 + $0xe0] sm:$0xff]
    %v638 = vld [vmem:[#allocation5 + $0xe8] sm:$0xff]
    %v639 = vld [vmem:[#allocation5 + $0xf0] sm:$0xff]
    %v640 = vld [vmem:[#allocation5 + $0xf8] sm:$0xff]
    %v641 = vld [vmem:[#allocation5 + $0x100] sm:$0xff]
    %v642 = vld [vmem:[#allocation5 + $0x108] sm:$0xff]
    %v643 = vld [vmem:[#allocation5 + $0x110] sm:$0xff]
    %v644 = vld [vmem:[#allocation5 + $0x118] sm:$0xff]
    %v645 = vld [vmem:[#allocation5 + $0x120] sm:$0xff]
    %v646 = vld [vmem:[#allocation5 + $0x128] sm:$0xff]
    %v647 = vld [vmem:[#allocation5 + $0x130] sm:$0xff]
    %v648 = vld [vmem:[#allocation5 + $0x138] sm:$0xff]
    %v649 = vld [vmem:[%s5] sm:$0xf]
    %v651 = vlaneseq
    %v652 = vshrl.u32 %v651, 7
    %v653 = vsub.s32 0, %v652
    %v654 = vrot.slane %v649, %v653
    %v655 = vlaneseq
    %v656 = vshrl.u32 %v655, 7
    %v657 = vsub.s32 1, %v656
    %v658 = vrot.slane %v649, %v657
    %v659 = vlaneseq
    %v660 = vshrl.u32 %v659, 7
    %v661 = vsub.s32 2, %v660
    %v662 = vrot.slane %v649, %v661
    %v663 = vlaneseq
    %v664 = vshrl.u32 %v663, 7
    %v665 = vsub.s32 3, %v664
    %v666 = vrot.slane %v649, %v665
    %v711 = vunpack.c.l.b16 %v609
    %v712 = vunpack.c.h.b16 %v609
    %v713 = vunpack.c.l.b16 %v610
    %v714 = vunpack.c.h.b16 %v610
    %v715 = vunpack.c.l.b16 %v611
    %v716 = vunpack.c.h.b16 %v611
    %v717 = vunpack.c.l.b16 %v612
    %v718 = vunpack.c.h.b16 %v612
    %v719 = vunpack.c.l.b16 %v613
    %v720 = vunpack.c.h.b16 %v613
    %v721 = vunpack.c.l.b16 %v614
    %v722 = vunpack.c.h.b16 %v614
    %v723 = vunpack.c.l.b16 %v615
    %v724 = vunpack.c.h.b16 %v615
    %v725 = vunpack.c.l.b16 %v616
    %v726 = vunpack.c.h.b16 %v616
    %v727 = vunpack.c.l.b16 %v617
    %v728 = vunpack.c.h.b16 %v617
    %v729 = vunpack.c.l.b16 %v618
    %v730 = vunpack.c.h.b16 %v618
    %v731 = vunpack.c.l.b16 %v619
    %v732 = vunpack.c.h.b16 %v619
    %v733 = vunpack.c.l.b16 %v620
    %v734 = vunpack.c.h.b16 %v620
    %v735 = vunpack.c.l.b16 %v621
    %v736 = vunpack.c.h.b16 %v621
    %v737 = vunpack.c.l.b16 %v622
    %v738 = vunpack.c.h.b16 %v622
    %v739 = vunpack.c.l.b16 %v623
    %v740 = vunpack.c.h.b16 %v623
    %v741 = vunpack.c.l.b16 %v624
    %v742 = vunpack.c.h.b16 %v624
    %v743 = vunpack.c.l.b16 %v625
    %v744 = vunpack.c.h.b16 %v625
    %v745 = vunpack.c.l.b16 %v626
    %v746 = vunpack.c.h.b16 %v626
    %v747 = vunpack.c.l.b16 %v627
    %v748 = vunpack.c.h.b16 %v627
    %v749 = vunpack.c.l.b16 %v628
    %v750 = vunpack.c.h.b16 %v628
    %v751 = vunpack.c.l.b16 %v629
    %v752 = vunpack.c.h.b16 %v629
    %v753 = vunpack.c.l.b16 %v630
    %v754 = vunpack.c.h.b16 %v630
    %v755 = vunpack.c.l.b16 %v631
    %v756 = vunpack.c.h.b16 %v631
    %v757 = vunpack.c.l.b16 %v632
    %v758 = vunpack.c.h.b16 %v632
    %v759 = vunpack.c.l.b16 %v633
    %v760 = vunpack.c.h.b16 %v633
    %v761 = vunpack.c.l.b16 %v634
    %v762 = vunpack.c.h.b16 %v634
    %v763 = vunpack.c.l.b16 %v635
    %v764 = vunpack.c.h.b16 %v635
    %v765 = vunpack.c.l.b16 %v636
    %v766 = vunpack.c.h.b16 %v636
    %v767 = vunpack.c.l.b16 %v637
    %v768 = vunpack.c.h.b16 %v637
    %v769 = vunpack.c.l.b16 %v638
    %v770 = vunpack.c.h.b16 %v638
    %v771 = vunpack.c.l.b16 %v639
    %v772 = vunpack.c.h.b16 %v639
    %v773 = vunpack.c.l.b16 %v640
    %v774 = vunpack.c.h.b16 %v640
    %v775 = vunpack.c.l.b16 %v641
    %v776 = vunpack.c.h.b16 %v641
    %v777 = vunpack.c.l.b16 %v642
    %v778 = vunpack.c.h.b16 %v642
    %v779 = vunpack.c.l.b16 %v643
    %v780 = vunpack.c.h.b16 %v643
    %v781 = vunpack.c.l.b16 %v644
    %v782 = vunpack.c.h.b16 %v644
    %v783 = vunpack.c.l.b16 %v645
    %v784 = vunpack.c.h.b16 %v645
    %v785 = vunpack.c.l.b16 %v646
    %v786 = vunpack.c.h.b16 %v646
    %v787 = vunpack.c.l.b16 %v647
    %v788 = vunpack.c.h.b16 %v647
    %v789 = vunpack.c.l.b16 %v648
    %v790 = vunpack.c.h.b16 %v648
    %v791 = vpack.c.b16 %v715, %v711
    %v792 = vpack.c.b16 %v716, %v712
    %v793 = vpack.c.b16 %v717, %v713
    %v794 = vpack.c.b16 %v718, %v714
    %v795 = vpack.c.b16 %v723, %v719
    %v796 = vpack.c.b16 %v724, %v720
    %v797 = vpack.c.b16 %v725, %v721
    %v798 = vpack.c.b16 %v726, %v722
    %v799 = vpack.c.b16 %v731, %v727
    %v800 = vpack.c.b16 %v732, %v728
    %v801 = vpack.c.b16 %v733, %v729
    %v802 = vpack.c.b16 %v734, %v730
    %v803 = vpack.c.b16 %v739, %v735
    %v804 = vpack.c.b16 %v740, %v736
    %v805 = vpack.c.b16 %v741, %v737
    %v806 = vpack.c.b16 %v742, %v738
    %v807 = vpack.c.b16 %v747, %v743
    %v808 = vpack.c.b16 %v748, %v744
    %v809 = vpack.c.b16 %v749, %v745
    %v810 = vpack.c.b16 %v750, %v746
    %v811 = vpack.c.b16 %v755, %v751
    %v812 = vpack.c.b16 %v756, %v752
    %v813 = vpack.c.b16 %v757, %v753
    %v814 = vpack.c.b16 %v758, %v754
    %v815 = vpack.c.b16 %v763, %v759
    %v816 = vpack.c.b16 %v764, %v760
    %v817 = vpack.c.b16 %v765, %v761
    %v818 = vpack.c.b16 %v766, %v762
    %v819 = vpack.c.b16 %v771, %v767
    %v820 = vpack.c.b16 %v772, %v768
    %v821 = vpack.c.b16 %v773, %v769
    %v822 = vpack.c.b16 %v774, %v770
    %v823 = vpack.c.b16 %v779, %v775
    %v824 = vpack.c.b16 %v780, %v776
    %v825 = vpack.c.b16 %v781, %v777
    %v826 = vpack.c.b16 %v782, %v778
    %v827 = vpack.c.b16 %v787, %v783
    %v828 = vpack.c.b16 %v788, %v784
    %v829 = vpack.c.b16 %v789, %v785
    %v830 = vpack.c.b16 %v790, %v786
    %vm871 = vcmask 261120
    %v873 = vsel %vm871, %v112, 0
    %875 = vmatprep.subr.bf16.mxu0 %v792
    %876 = vmatpush1.bf16.msra.mxu0 %v791
    %877 = vmatprep.subr.bf16.mxu0 %v796
    %878 = vmatpush1.bf16.msra.mxu0 %v795
    %879 = vmatprep.subr.bf16.mxu0 %v800
    %880 = vmatpush1.bf16.msra.mxu0 %v799
    %881 = vmatprep.subr.bf16.mxu0 %v804
    %882 = vmatpush1.bf16.msra.mxu0 %v803
    %883 = vmatprep.subr.bf16.mxu0 %v808
    %884 = vmatpush1.bf16.msra.mxu0 %v807
    %885 = vmatprep.subr.bf16.mxu0 %v812
    %886 = vmatpush1.bf16.msra.mxu0 %v811
    %887 = vmatprep.subr.bf16.mxu0 %v816
    %888 = vmatpush1.bf16.msra.mxu0 %v815
    %889 = vmatprep.subr.bf16.mxu0 %v820
    %890 = vmatpush1.bf16.msra.mxu0 %v819
    %891 = vmatprep.subr.bf16.mxu0 %v824
    %892 = vmatpush1.bf16.msra.mxu0 %v823
    %893 = vmatprep.subr.bf16.mxu0 %v828
    %894 = vmatpush1.bf16.msra.mxu0 %v827
    %895 = vmatprep.subr.bf16.mxu0 0
    %896 = vmatpush1.bf16.msra.mxu0 0
    %897 = vmatprep.subr.bf16.mxu0 0
    %898 = vmatpush1.bf16.msra.mxu0 0
    %899 = vmatprep.subr.bf16.mxu0 0
    %900 = vmatpush1.bf16.msra.mxu0 0
    %901 = vmatprep.subr.bf16.mxu0 0
    %902 = vmatpush1.bf16.msra.mxu0 0
    %903 = vmatprep.subr.bf16.mxu0 0
    %904 = vmatpush1.bf16.msra.mxu0 0
    %905 = vmatprep.subr.bf16.mxu0 0
    %906 = vmatpush1.bf16.msra.mxu0 0
    %907 = vmatprep.mubr.bf16.mxu0 %v873
    %908 = vmatmul.mubr.bf16.gmra.mrb[0].mxu0 %v111
    %v909 = vpop.f32.mrb[0].mxu0
    %v910 = vadd.f32 %v654, %v909
    %v911 = vpop.f32.mrb[0].mxu0
    %v912 = vadd.f32 %v658, %v911
    %v913 = vpop.f32.mrb[0].mxu0
    %v914 = vpop.f32.mrb[0].mxu0
    %915 = vdwg.mxu0
    %916 = vmatprep.subr.bf16.mxu0 %v794
    %917 = vmatpush1.bf16.msra.mxu0 %v793
    %918 = vmatprep.subr.bf16.mxu0 %v798
    %919 = vmatpush1.bf16.msra.mxu0 %v797
    %920 = vmatprep.subr.bf16.mxu0 %v802
    %921 = vmatpush1.bf16.msra.mxu0 %v801
    %922 = vmatprep.subr.bf16.mxu0 %v806
    %923 = vmatpush1.bf16.msra.mxu0 %v805
    %924 = vmatprep.subr.bf16.mxu0 %v810
    %925 = vmatpush1.bf16.msra.mxu0 %v809
    %926 = vmatprep.subr.bf16.mxu0 %v814
    %927 = vmatpush1.bf16.msra.mxu0 %v813
    %928 = vmatprep.subr.bf16.mxu0 %v818
    %929 = vmatpush1.bf16.msra.mxu0 %v817
    %930 = vmatprep.subr.bf16.mxu0 %v822
    %931 = vmatpush1.bf16.msra.mxu0 %v821
    %932 = vmatprep.subr.bf16.mxu0 %v826
    %933 = vmatpush1.bf16.msra.mxu0 %v825
    %934 = vmatprep.subr.bf16.mxu0 %v830
    %935 = vmatpush1.bf16.msra.mxu0 %v829
    %936 = vmatprep.subr.bf16.mxu0 0
    %937 = vmatpush1.bf16.msra.mxu0 0
    %938 = vmatprep.subr.bf16.mxu0 0
    %939 = vmatpush1.bf16.msra.mxu0 0
    %940 = vmatprep.subr.bf16.mxu0 0
    %941 = vmatpush1.bf16.msra.mxu0 0
    %942 = vmatprep.subr.bf16.mxu0 0
    %943 = vmatpush1.bf16.msra.mxu0 0
    %944 = vmatprep.subr.bf16.mxu0 0
    %945 = vmatpush1.bf16.msra.mxu0 0
    %946 = vmatprep.subr.bf16.mxu0 0
    %947 = vmatpush1.bf16.msra.mxu0 0
    %948 = vmatprep.mubr.bf16.mxu0 %v873
    %949 = vmatmul.mubr.bf16.gmra.mrb[0].mxu0 %v111
    %v950 = vpop.f32.mrb[0].mxu0
    %v951 = vadd.f32 %v662, %v950
    %v952 = vpop.f32.mrb[0].mxu0
    %v953 = vadd.f32 %v666, %v952
    %v954 = vpop.f32.mrb[0].mxu0
    %v955 = vpop.f32.mrb[0].mxu0
    %956 = vdwg.mxu0
    %v957 = vmax.f32 %v910, 0.0
    %v958 = vmax.f32 %v912, 0.0
    %v959 = vmax.f32 %v951, 0.0
    %v960 = vmax.f32 %v953, 0.0
    %v961 = vpack.c.bf16 %v957, %v957
    %v962 = vpack.c.bf16 %v958, %v958
    %v963 = vpack.c.bf16 %v959, %v959
    %v964 = vpack.c.bf16 %v960, %v960
    %v965 = vld [vmem:[#allocation7] sm:$0xf]
    %v966 = vld [vmem:[#allocation7 + $0x4] sm:$0xf]
    %v967 = vld [vmem:[#allocation7 + $0x8] sm:$0xf]
    %v968 = vld [vmem:[#allocation7 + $0xc] sm:$0xf]
    %v969 = vld [vmem:[#allocation7 + $0x10] sm:$0xf]
    %v970 = vld [vmem:[#allocation7 + $0x14] sm:$0xf]
    %v971 = vld [vmem:[#allocation7 + $0x18] sm:$0xf]
    %v972 = vld [vmem:[#allocation7 + $0x1c] sm:$0xf]
    %v973 = vld [vmem:[#allocation7 + $0x20] sm:$0xf]
    %v974 = vld [vmem:[#allocation7 + $0x24] sm:$0xf]
    %v975 = vld [vmem:[#allocation7 + $0x28] sm:$0xf]
    %v976 = vld [vmem:[#allocation7 + $0x2c] sm:$0xf]
    %v977 = vld [vmem:[#allocation7 + $0x30] sm:$0xf]
    %v978 = vld [vmem:[#allocation7 + $0x34] sm:$0xf]
    %v979 = vld [vmem:[#allocation7 + $0x38] sm:$0xf]
    %v980 = vld [vmem:[#allocation7 + $0x3c] sm:$0xf]
    %v981 = vld [vmem:[#allocation7 + $0x40] sm:$0xf]
    %v982 = vld [vmem:[#allocation7 + $0x44] sm:$0xf]
    %v983 = vld [vmem:[#allocation7 + $0x48] sm:$0xf]
    %v984 = vld [vmem:[#allocation7 + $0x4c] sm:$0xf]
    %v985 = vld [vmem:[#allocation7 + $0x50] sm:$0xf]
    %v986 = vld [vmem:[#allocation7 + $0x54] sm:$0xf]
    %v987 = vld [vmem:[#allocation7 + $0x58] sm:$0xf]
    %v988 = vld [vmem:[#allocation7 + $0x5c] sm:$0xf]
    %v989 = vld [vmem:[#allocation7 + $0x60] sm:$0xf]
    %v990 = vld [vmem:[#allocation7 + $0x64] sm:$0xf]
    %v991 = vld [vmem:[#allocation7 + $0x68] sm:$0xf]
    %v992 = vld [vmem:[#allocation7 + $0x6c] sm:$0xf]
    %v993 = vld [vmem:[#allocation7 + $0x70] sm:$0xf]
    %v994 = vld [vmem:[#allocation7 + $0x74] sm:$0xf]
    %v995 = vld [vmem:[#allocation7 + $0x78] sm:$0xf]
    %v996 = vld [vmem:[#allocation7 + $0x7c] sm:$0xf]
    %v997 = vld [vmem:[#allocation7 + $0x80] sm:$0xf]
    %v998 = vld [vmem:[#allocation7 + $0x84] sm:$0xf]
    %v999 = vld [vmem:[#allocation7 + $0x88] sm:$0xf]
    %v1000 = vld [vmem:[#allocation7 + $0x8c] sm:$0xf]
    %v1001 = vld [vmem:[#allocation7 + $0x90] sm:$0xf]
    %v1002 = vld [vmem:[#allocation7 + $0x94] sm:$0xf]
    %v1003 = vld [vmem:[#allocation7 + $0x98] sm:$0xf]
    %v1004 = vld [vmem:[#allocation7 + $0x9c] sm:$0xf]
    %v1005 = vld [vmem:[#allocation7 + $0xa0] sm:$0xf]
    %v1006 = vld [vmem:[#allocation7 + $0xa4] sm:$0xf]
    %v1007 = vld [vmem:[#allocation7 + $0xa8] sm:$0xf]
    %v1008 = vld [vmem:[#allocation7 + $0xac] sm:$0xf]
    %v1009 = vld [vmem:[#allocation7 + $0xb0] sm:$0xf]
    %v1010 = vld [vmem:[#allocation7 + $0xb4] sm:$0xf]
    %v1011 = vld [vmem:[#allocation7 + $0xb8] sm:$0xf]
    %v1012 = vld [vmem:[#allocation7 + $0xbc] sm:$0xf]
    %v1013 = vld [vmem:[#allocation7 + $0xc0] sm:$0xf]
    %v1014 = vld [vmem:[#allocation7 + $0xc4] sm:$0xf]
    %v1015 = vld [vmem:[#allocation7 + $0xc8] sm:$0xf]
    %v1016 = vld [vmem:[#allocation7 + $0xcc] sm:$0xf]
    %v1017 = vld [vmem:[#allocation7 + $0xd0] sm:$0xf]
    %v1018 = vld [vmem:[#allocation7 + $0xd4] sm:$0xf]
    %v1019 = vld [vmem:[#allocation7 + $0xd8] sm:$0xf]
    %v1020 = vld [vmem:[#allocation7 + $0xdc] sm:$0xf]
    %v1021 = vld [vmem:[#allocation7 + $0xe0] sm:$0xf]
    %v1022 = vld [vmem:[#allocation7 + $0xe4] sm:$0xf]
    %v1023 = vld [vmem:[#allocation7 + $0xe8] sm:$0xf]
    %v1024 = vld [vmem:[#allocation7 + $0xec] sm:$0xf]
    %v1025 = vld [vmem:[#allocation7 + $0xf0] sm:$0xf]
    %v1026 = vld [vmem:[#allocation7 + $0xf4] sm:$0xf]
    %v1027 = vld [vmem:[#allocation7 + $0xf8] sm:$0xf]
    %v1028 = vld [vmem:[#allocation7 + $0xfc] sm:$0xf]
    %v1029 = vld [vmem:[#allocation8] sm:$0xf]
    %v1030 = vld [vmem:[#allocation8 + $0x4] sm:$0xf]
    %v1031 = vld [vmem:[#allocation8 + $0x8] sm:$0xf]
    %v1032 = vld [vmem:[#allocation8 + $0xc] sm:$0xf]
    %v1033 = vld [vmem:[#allocation8 + $0x10] sm:$0xf]
    %v1034 = vld [vmem:[#allocation8 + $0x14] sm:$0xf]
    %v1035 = vld [vmem:[#allocation8 + $0x18] sm:$0xf]
    %v1036 = vld [vmem:[#allocation8 + $0x1c] sm:$0xf]
    %v1037 = vld [vmem:[#allocation8 + $0x20] sm:$0xf]
    %v1038 = vld [vmem:[#allocation8 + $0x24] sm:$0xf]
    %v1039 = vld [vmem:[#allocation8 + $0x28] sm:$0xf]
    %v1040 = vld [vmem:[#allocation8 + $0x2c] sm:$0xf]
    %v1041 = vld [vmem:[#allocation8 + $0x30] sm:$0xf]
    %v1042 = vld [vmem:[#allocation8 + $0x34] sm:$0xf]
    %v1043 = vld [vmem:[#allocation8 + $0x38] sm:$0xf]
    %v1044 = vld [vmem:[#allocation8 + $0x3c] sm:$0xf]
    %v1045 = vld [vmem:[#allocation8 + $0x40] sm:$0xf]
    %v1046 = vld [vmem:[#allocation8 + $0x44] sm:$0xf]
    %v1047 = vld [vmem:[#allocation8 + $0x48] sm:$0xf]
    %v1048 = vld [vmem:[#allocation8 + $0x4c] sm:$0xf]
    %v1049 = vld [vmem:[#allocation8 + $0x50] sm:$0xf]
    %v1050 = vld [vmem:[#allocation8 + $0x54] sm:$0xf]
    %v1051 = vld [vmem:[#allocation8 + $0x58] sm:$0xf]
    %v1052 = vld [vmem:[#allocation8 + $0x5c] sm:$0xf]
    %v1053 = vld [vmem:[#allocation8 + $0x60] sm:$0xf]
    %v1054 = vld [vmem:[#allocation8 + $0x64] sm:$0xf]
    %v1055 = vld [vmem:[#allocation8 + $0x68] sm:$0xf]
    %v1056 = vld [vmem:[#allocation8 + $0x6c] sm:$0xf]
    %v1057 = vld [vmem:[#allocation8 + $0x70] sm:$0xf]
    %v1058 = vld [vmem:[#allocation8 + $0x74] sm:$0xf]
    %v1059 = vld [vmem:[#allocation8 + $0x78] sm:$0xf]
    %v1060 = vld [vmem:[#allocation8 + $0x7c] sm:$0xf]
    %v1061 = vld [vmem:[#allocation8 + $0x80] sm:$0xf]
    %v1062 = vld [vmem:[#allocation8 + $0x84] sm:$0xf]
    %v1063 = vld [vmem:[#allocation8 + $0x88] sm:$0xf]
    %v1064 = vld [vmem:[#allocation8 + $0x8c] sm:$0xf]
    %v1065 = vld [vmem:[#allocation8 + $0x90] sm:$0xf]
    %v1066 = vld [vmem:[#allocation8 + $0x94] sm:$0xf]
    %v1067 = vld [vmem:[#allocation8 + $0x98] sm:$0xf]
    %v1068 = vld [vmem:[#allocation8 + $0x9c] sm:$0xf]
    %v1069 = vld [vmem:[#allocation8 + $0xa0] sm:$0xf]
    %v1070 = vld [vmem:[#allocation8 + $0xa4] sm:$0xf]
    %v1071 = vld [vmem:[#allocation8 + $0xa8] sm:$0xf]
    %v1072 = vld [vmem:[#allocation8 + $0xac] sm:$0xf]
    %v1073 = vld [vmem:[#allocation8 + $0xb0] sm:$0xf]
    %v1074 = vld [vmem:[#allocation8 + $0xb4] sm:$0xf]
    %v1075 = vld [vmem:[#allocation8 + $0xb8] sm:$0xf]
    %v1076 = vld [vmem:[#allocation8 + $0xbc] sm:$0xf]
    %v1077 = vld [vmem:[#allocation8 + $0xc0] sm:$0xf]
    %v1078 = vld [vmem:[#allocation8 + $0xc4] sm:$0xf]
    %v1079 = vld [vmem:[#allocation8 + $0xc8] sm:$0xf]
    %v1080 = vld [vmem:[#allocation8 + $0xcc] sm:$0xf]
    %v1081 = vld [vmem:[#allocation8 + $0xd0] sm:$0xf]
    %v1082 = vld [vmem:[#allocation8 + $0xd4] sm:$0xf]
    %v1083 = vld [vmem:[#allocation8 + $0xd8] sm:$0xf]
    %v1084 = vld [vmem:[#allocation8 + $0xdc] sm:$0xf]
    %v1085 = vld [vmem:[#allocation8 + $0xe0] sm:$0xf]
    %v1086 = vld [vmem:[#allocation8 + $0xe4] sm:$0xf]
    %v1087 = vld [vmem:[#allocation8 + $0xe8] sm:$0xf]
    %v1088 = vld [vmem:[#allocation8 + $0xec] sm:$0xf]
    %v1089 = vld [vmem:[#allocation8 + $0xf0] sm:$0xf]
    %v1090 = vld [vmem:[#allocation8 + $0xf4] sm:$0xf]
    %v1091 = vld [vmem:[#allocation8 + $0xf8] sm:$0xf]
    %v1092 = vld [vmem:[#allocation8 + $0xfc] sm:$0xf]
    %v1157 = vunpack.c.l.b16 %v1029
    %v1158 = vunpack.c.l.b16 %v1030
    %v1159 = vunpack.c.l.b16 %v1031
    %v1160 = vunpack.c.l.b16 %v1032
    %v1161 = vunpack.c.l.b16 %v1033
    %v1162 = vunpack.c.l.b16 %v1034
    %v1163 = vunpack.c.l.b16 %v1035
    %v1164 = vunpack.c.l.b16 %v1036
    %v1165 = vunpack.c.l.b16 %v1037
    %v1166 = vunpack.c.l.b16 %v1038
    %v1167 = vunpack.c.l.b16 %v1039
    %v1168 = vunpack.c.l.b16 %v1040
    %v1169 = vunpack.c.l.b16 %v1041
    %v1170 = vunpack.c.l.b16 %v1042
    %v1171 = vunpack.c.l.b16 %v1043
    %v1172 = vunpack.c.l.b16 %v1044
    %v1173 = vunpack.c.l.b16 %v1045
    %v1174 = vunpack.c.l.b16 %v1046
    %v1175 = vunpack.c.l.b16 %v1047
    %v1176 = vunpack.c.l.b16 %v1048
    %v1177 = vunpack.c.l.b16 %v1049
    %v1178 = vunpack.c.l.b16 %v1050
    %v1179 = vunpack.c.l.b16 %v1051
    %v1180 = vunpack.c.l.b16 %v1052
    %v1181 = vunpack.c.l.b16 %v1053
    %v1182 = vunpack.c.l.b16 %v1054
    %v1183 = vunpack.c.l.b16 %v1055
    %v1184 = vunpack.c.l.b16 %v1056
    %v1185 = vunpack.c.l.b16 %v1057
    %v1186 = vunpack.c.l.b16 %v1058
    %v1187 = vunpack.c.l.b16 %v1059
    %v1188 = vunpack.c.l.b16 %v1060
    %v1189 = vunpack.c.l.b16 %v1061
    %v1190 = vunpack.c.l.b16 %v1062
    %v1191 = vunpack.c.l.b16 %v1063
    %v1192 = vunpack.c.l.b16 %v1064
    %v1193 = vunpack.c.l.b16 %v1065
    %v1194 = vunpack.c.l.b16 %v1066
    %v1195 = vunpack.c.l.b16 %v1067
    %v1196 = vunpack.c.l.b16 %v1068
    %v1197 = vunpack.c.l.b16 %v1069
    %v1198 = vunpack.c.l.b16 %v1070
    %v1199 = vunpack.c.l.b16 %v1071
    %v1200 = vunpack.c.l.b16 %v1072
    %v1201 = vunpack.c.l.b16 %v1073
    %v1202 = vunpack.c.l.b16 %v1074
    %v1203 = vunpack.c.l.b16 %v1075
    %v1204 = vunpack.c.l.b16 %v1076
    %v1205 = vunpack.c.l.b16 %v1077
    %v1206 = vunpack.c.l.b16 %v1078
    %v1207 = vunpack.c.l.b16 %v1079
    %v1208 = vunpack.c.l.b16 %v1080
    %v1209 = vunpack.c.l.b16 %v1081
    %v1210 = vunpack.c.l.b16 %v1082
    %v1211 = vunpack.c.l.b16 %v1083
    %v1212 = vunpack.c.l.b16 %v1084
    %v1213 = vunpack.c.l.b16 %v1085
    %v1214 = vunpack.c.l.b16 %v1086
    %v1215 = vunpack.c.l.b16 %v1087
    %v1216 = vunpack.c.l.b16 %v1088
    %v1217 = vunpack.c.l.b16 %v1089
    %v1218 = vunpack.c.l.b16 %v1090
    %v1219 = vunpack.c.l.b16 %v1091
    %v1220 = vunpack.c.l.b16 %v1092
    %v1221 = vpack.c.b16 %v1158, %v1157
    %v1222 = vpack.c.b16 %v1160, %v1159
    %v1223 = vpack.c.b16 %v1162, %v1161
    %v1224 = vpack.c.b16 %v1164, %v1163
    %v1225 = vpack.c.b16 %v1166, %v1165
    %v1226 = vpack.c.b16 %v1168, %v1167
    %v1227 = vpack.c.b16 %v1170, %v1169
    %v1228 = vpack.c.b16 %v1172, %v1171
    %v1229 = vpack.c.b16 %v1174, %v1173
    %v1230 = vpack.c.b16 %v1176, %v1175
    %v1231 = vpack.c.b16 %v1178, %v1177
    %v1232 = vpack.c.b16 %v1180, %v1179
    %v1233 = vpack.c.b16 %v1182, %v1181
    %v1234 = vpack.c.b16 %v1184, %v1183
    %v1235 = vpack.c.b16 %v1186, %v1185
    %v1236 = vpack.c.b16 %v1188, %v1187
    %v1237 = vpack.c.b16 %v1190, %v1189
    %v1238 = vpack.c.b16 %v1192, %v1191
    %v1239 = vpack.c.b16 %v1194, %v1193
    %v1240 = vpack.c.b16 %v1196, %v1195
    %v1241 = vpack.c.b16 %v1198, %v1197
    %v1242 = vpack.c.b16 %v1200, %v1199
    %v1243 = vpack.c.b16 %v1202, %v1201
    %v1244 = vpack.c.b16 %v1204, %v1203
    %v1245 = vpack.c.b16 %v1206, %v1205
    %v1246 = vpack.c.b16 %v1208, %v1207
    %v1247 = vpack.c.b16 %v1210, %v1209
    %v1248 = vpack.c.b16 %v1212, %v1211
    %v1249 = vpack.c.b16 %v1214, %v1213
    %v1250 = vpack.c.b16 %v1216, %v1215
    %v1251 = vpack.c.b16 %v1218, %v1217
    %v1252 = vpack.c.b16 %v1220, %v1219
    %1285 = vmatprep.subr.bf16.mxu0 0
    %1286 = vmatpush1.bf16.msra.mxu0 %v1221
    %1287 = vmatprep.subr.bf16.mxu0 0
    %1288 = vmatpush1.bf16.msra.mxu0 %v1222
    %1289 = vmatprep.subr.bf16.mxu0 0
    %1290 = vmatpush1.bf16.msra.mxu0 %v1223
    %1291 = vmatprep.subr.bf16.mxu0 0
    %1292 = vmatpush1.bf16.msra.mxu0 %v1224
    %1293 = vmatprep.subr.bf16.mxu0 0
    %1294 = vmatpush1.bf16.msra.mxu0 %v1225
    %1295 = vmatprep.subr.bf16.mxu0 0
    %1296 = vmatpush1.bf16.msra.mxu0 %v1226
    %1297 = vmatprep.subr.bf16.mxu0 0
    %1298 = vmatpush1.bf16.msra.mxu0 %v1227
    %1299 = vmatprep.subr.bf16.mxu0 0
    %1300 = vmatpush1.bf16.msra.mxu0 %v1228
    %1301 = vmatprep.subr.bf16.mxu0 0
    %1302 = vmatpush1.bf16.msra.mxu0 %v1229
    %1303 = vmatprep.subr.bf16.mxu0 0
    %1304 = vmatpush1.bf16.msra.mxu0 %v1230
    %1305 = vmatprep.subr.bf16.mxu0 0
    %1306 = vmatpush1.bf16.msra.mxu0 %v1231
    %1307 = vmatprep.subr.bf16.mxu0 0
    %1308 = vmatpush1.bf16.msra.mxu0 %v1232
    %1309 = vmatprep.subr.bf16.mxu0 0
    %1310 = vmatpush1.bf16.msra.mxu0 %v1233
    %1311 = vmatprep.subr.bf16.mxu0 0
    %1312 = vmatpush1.bf16.msra.mxu0 %v1234
    %1313 = vmatprep.subr.bf16.mxu0 0
    %1314 = vmatpush1.bf16.msra.mxu0 %v1235
    %1315 = vmatprep.subr.bf16.mxu0 0
    %1316 = vmatpush1.bf16.msra.mxu0 %v1236
    %1317 = vmatprep.mubr.bf16.mxu0 %v962
    %1318 = vmatmul.mubr.bf16.gmra.mrb[0].mxu0 %v961
    %v1319 = vpop.f32.mrb[0].mxu0
    %v1320 = vadd.f32 0.0, %v1319
    %v1321 = vpop.f32.mrb[0].mxu0
    %v1322 = vpop.f32.mrb[0].mxu0
    %v1323 = vpop.f32.mrb[0].mxu0
    %1324 = vdwg.mxu0
    %1325 = vmatprep.subr.bf16.mxu0 0
    %1326 = vmatpush1.bf16.msra.mxu0 %v1237
    %1327 = vmatprep.subr.bf16.mxu0 0
    %1328 = vmatpush1.bf16.msra.mxu0 %v1238
    %1329 = vmatprep.subr.bf16.mxu0 0
    %1330 = vmatpush1.bf16.msra.mxu0 %v1239
    %1331 = vmatprep.subr.bf16.mxu0 0
    %1332 = vmatpush1.bf16.msra.mxu0 %v1240
    %1333 = vmatprep.subr.bf16.mxu0 0
    %1334 = vmatpush1.bf16.msra.mxu0 %v1241
    %1335 = vmatprep.subr.bf16.mxu0 0
    %1336 = vmatpush1.bf16.msra.mxu0 %v1242
    %1337 = vmatprep.subr.bf16.mxu0 0
    %1338 = vmatpush1.bf16.msra.mxu0 %v1243
    %1339 = vmatprep.subr.bf16.mxu0 0
    %1340 = vmatpush1.bf16.msra.mxu0 %v1244
    %1341 = vmatprep.subr.bf16.mxu0 0
    %1342 = vmatpush1.bf16.msra.mxu0 %v1245
    %1343 = vmatprep.subr.bf16.mxu0 0
    %1344 = vmatpush1.bf16.msra.mxu0 %v1246
    %1345 = vmatprep.subr.bf16.mxu0 0
    %1346 = vmatpush1.bf16.msra.mxu0 %v1247
    %1347 = vmatprep.subr.bf16.mxu0 0
    %1348 = vmatpush1.bf16.msra.mxu0 %v1248
    %1349 = vmatprep.subr.bf16.mxu0 0
    %1350 = vmatpush1.bf16.msra.mxu0 %v1249
    %1351 = vmatprep.subr.bf16.mxu0 0
    %1352 = vmatpush1.bf16.msra.mxu0 %v1250
    %1353 = vmatprep.subr.bf16.mxu0 0
    %1354 = vmatpush1.bf16.msra.mxu0 %v1251
    %1355 = vmatprep.subr.bf16.mxu0 0
    %1356 = vmatpush1.bf16.msra.mxu0 %v1252
    %1357 = vmatprep.mubr.bf16.mxu0 %v964
    %1358 = vmatmul.mubr.bf16.gmra.mrb[0].mxu0 %v963
    %v1359 = vpop.f32.mrb[0].mxu0
    %v1360 = vadd.f32 %v1320, %v1359
    %v1361 = vpop.f32.mrb[0].mxu0
    %v1362 = vpop.f32.mrb[0].mxu0
    %v1363 = vpop.f32.mrb[0].mxu0
    %1364 = vdwg.mxu0
    %v1429 = vunpack.c.l.b16 %v965
    %v1430 = vunpack.c.l.b16 %v966
    %v1431 = vunpack.c.l.b16 %v967
    %v1432 = vunpack.c.l.b16 %v968
    %v1433 = vunpack.c.l.b16 %v969
    %v1434 = vunpack.c.l.b16 %v970
    %v1435 = vunpack.c.l.b16 %v971
    %v1436 = vunpack.c.l.b16 %v972
    %v1437 = vunpack.c.l.b16 %v973
    %v1438 = vunpack.c.l.b16 %v974
    %v1439 = vunpack.c.l.b16 %v975
    %v1440 = vunpack.c.l.b16 %v976
    %v1441 = vunpack.c.l.b16 %v977
    %v1442 = vunpack.c.l.b16 %v978
    %v1443 = vunpack.c.l.b16 %v979
    %v1444 = vunpack.c.l.b16 %v980
    %v1445 = vunpack.c.l.b16 %v981
    %v1446 = vunpack.c.l.b16 %v982
    %v1447 = vunpack.c.l.b16 %v983
    %v1448 = vunpack.c.l.b16 %v984
    %v1449 = vunpack.c.l.b16 %v985
    %v1450 = vunpack.c.l.b16 %v986
    %v1451 = vunpack.c.l.b16 %v987
    %v1452 = vunpack.c.l.b16 %v988
    %v1453 = vunpack.c.l.b16 %v989
    %v1454 = vunpack.c.l.b16 %v990
    %v1455 = vunpack.c.l.b16 %v991
    %v1456 = vunpack.c.l.b16 %v992
    %v1457 = vunpack.c.l.b16 %v993
    %v1458 = vunpack.c.l.b16 %v994
    %v1459 = vunpack.c.l.b16 %v995
    %v1460 = vunpack.c.l.b16 %v996
    %v1461 = vunpack.c.l.b16 %v997
    %v1462 = vunpack.c.l.b16 %v998
    %v1463 = vunpack.c.l.b16 %v999
    %v1464 = vunpack.c.l.b16 %v1000
    %v1465 = vunpack.c.l.b16 %v1001
    %v1466 = vunpack.c.l.b16 %v1002
    %v1467 = vunpack.c.l.b16 %v1003
    %v1468 = vunpack.c.l.b16 %v1004
    %v1469 = vunpack.c.l.b16 %v1005
    %v1470 = vunpack.c.l.b16 %v1006
    %v1471 = vunpack.c.l.b16 %v1007
    %v1472 = vunpack.c.l.b16 %v1008
    %v1473 = vunpack.c.l.b16 %v1009
    %v1474 = vunpack.c.l.b16 %v1010
    %v1475 = vunpack.c.l.b16 %v1011
    %v1476 = vunpack.c.l.b16 %v1012
    %v1477 = vunpack.c.l.b16 %v1013
    %v1478 = vunpack.c.l.b16 %v1014
    %v1479 = vunpack.c.l.b16 %v1015
    %v1480 = vunpack.c.l.b16 %v1016
    %v1481 = vunpack.c.l.b16 %v1017
    %v1482 = vunpack.c.l.b16 %v1018
    %v1483 = vunpack.c.l.b16 %v1019
    %v1484 = vunpack.c.l.b16 %v1020
    %v1485 = vunpack.c.l.b16 %v1021
    %v1486 = vunpack.c.l.b16 %v1022
    %v1487 = vunpack.c.l.b16 %v1023
    %v1488 = vunpack.c.l.b16 %v1024
    %v1489 = vunpack.c.l.b16 %v1025
    %v1490 = vunpack.c.l.b16 %v1026
    %v1491 = vunpack.c.l.b16 %v1027
    %v1492 = vunpack.c.l.b16 %v1028
    %v1493 = vpack.c.b16 %v1430, %v1429
    %v1494 = vpack.c.b16 %v1432, %v1431
    %v1495 = vpack.c.b16 %v1434, %v1433
    %v1496 = vpack.c.b16 %v1436, %v1435
    %v1497 = vpack.c.b16 %v1438, %v1437
    %v1498 = vpack.c.b16 %v1440, %v1439
    %v1499 = vpack.c.b16 %v1442, %v1441
    %v1500 = vpack.c.b16 %v1444, %v1443
    %v1501 = vpack.c.b16 %v1446, %v1445
    %v1502 = vpack.c.b16 %v1448, %v1447
    %v1503 = vpack.c.b16 %v1450, %v1449
    %v1504 = vpack.c.b16 %v1452, %v1451
    %v1505 = vpack.c.b16 %v1454, %v1453
    %v1506 = vpack.c.b16 %v1456, %v1455
    %v1507 = vpack.c.b16 %v1458, %v1457
    %v1508 = vpack.c.b16 %v1460, %v1459
    %v1509 = vpack.c.b16 %v1462, %v1461
    %v1510 = vpack.c.b16 %v1464, %v1463
    %v1511 = vpack.c.b16 %v1466, %v1465
    %v1512 = vpack.c.b16 %v1468, %v1467
    %v1513 = vpack.c.b16 %v1470, %v1469
    %v1514 = vpack.c.b16 %v1472, %v1471
    %v1515 = vpack.c.b16 %v1474, %v1473
    %v1516 = vpack.c.b16 %v1476, %v1475
    %v1517 = vpack.c.b16 %v1478, %v1477
    %v1518 = vpack.c.b16 %v1480, %v1479
    %v1519 = vpack.c.b16 %v1482, %v1481
    %v1520 = vpack.c.b16 %v1484, %v1483
    %v1521 = vpack.c.b16 %v1486, %v1485
    %v1522 = vpack.c.b16 %v1488, %v1487
    %v1523 = vpack.c.b16 %v1490, %v1489
    %v1524 = vpack.c.b16 %v1492, %v1491
    %1557 = vmatprep.subr.bf16.mxu0 0
    %1558 = vmatpush1.bf16.msra.mxu0 %v1493
    %1559 = vmatprep.subr.bf16.mxu0 0
    %1560 = vmatpush1.bf16.msra.mxu0 %v1494
    %1561 = vmatprep.subr.bf16.mxu0 0
    %1562 = vmatpush1.bf16.msra.mxu0 %v1495
    %1563 = vmatprep.subr.bf16.mxu0 0
    %1564 = vmatpush1.bf16.msra.mxu0 %v1496
    %1565 = vmatprep.subr.bf16.mxu0 0
    %1566 = vmatpush1.bf16.msra.mxu0 %v1497
    %1567 = vmatprep.subr.bf16.mxu0 0
    %1568 = vmatpush1.bf16.msra.mxu0 %v1498
    %1569 = vmatprep.subr.bf16.mxu0 0
    %1570 = vmatpush1.bf16.msra.mxu0 %v1499
    %1571 = vmatprep.subr.bf16.mxu0 0
    %1572 = vmatpush1.bf16.msra.mxu0 %v1500
    %1573 = vmatprep.subr.bf16.mxu0 0
    %1574 = vmatpush1.bf16.msra.mxu0 %v1501
    %1575 = vmatprep.subr.bf16.mxu0 0
    %1576 = vmatpush1.bf16.msra.mxu0 %v1502
    %1577 = vmatprep.subr.bf16.mxu0 0
    %1578 = vmatpush1.bf16.msra.mxu0 %v1503
    %1579 = vmatprep.subr.bf16.mxu0 0
    %1580 = vmatpush1.bf16.msra.mxu0 %v1504
    %1581 = vmatprep.subr.bf16.mxu0 0
    %1582 = vmatpush1.bf16.msra.mxu0 %v1505
    %1583 = vmatprep.subr.bf16.mxu0 0
    %1584 = vmatpush1.bf16.msra.mxu0 %v1506
    %1585 = vmatprep.subr.bf16.mxu0 0
    %1586 = vmatpush1.bf16.msra.mxu0 %v1507
    %1587 = vmatprep.subr.bf16.mxu0 0
    %1588 = vmatpush1.bf16.msra.mxu0 %v1508
    %1589 = vmatprep.mubr.bf16.mxu0 %v606
    %1590 = vmatmul.mubr.bf16.gmra.mrb[0].mxu0 %v605
    %v1591 = vpop.f32.mrb[0].mxu0
    %v1592 = vadd.f32 %v1360, %v1591
    %v1593 = vpop.f32.mrb[0].mxu0
    %v1594 = vpop.f32.mrb[0].mxu0
    %v1595 = vpop.f32.mrb[0].mxu0
    %1596 = vdwg.mxu0
    %1597 = vmatprep.subr.bf16.mxu0 0
    %1598 = vmatpush1.bf16.msra.mxu0 %v1509
    %1599 = vmatprep.subr.bf16.mxu0 0
    %1600 = vmatpush1.bf16.msra.mxu0 %v1510
    %1601 = vmatprep.subr.bf16.mxu0 0
    %1602 = vmatpush1.bf16.msra.mxu0 %v1511
    %1603 = vmatprep.subr.bf16.mxu0 0
    %1604 = vmatpush1.bf16.msra.mxu0 %v1512
    %1605 = vmatprep.subr.bf16.mxu0 0
    %1606 = vmatpush1.bf16.msra.mxu0 %v1513
    %1607 = vmatprep.subr.bf16.mxu0 0
    %1608 = vmatpush1.bf16.msra.mxu0 %v1514
    %1609 = vmatprep.subr.bf16.mxu0 0
    %1610 = vmatpush1.bf16.msra.mxu0 %v1515
    %1611 = vmatprep.subr.bf16.mxu0 0
    %1612 = vmatpush1.bf16.msra.mxu0 %v1516
    %1613 = vmatprep.subr.bf16.mxu0 0
    %1614 = vmatpush1.bf16.msra.mxu0 %v1517
    %1615 = vmatprep.subr.bf16.mxu0 0
    %1616 = vmatpush1.bf16.msra.mxu0 %v1518
    %1617 = vmatprep.subr.bf16.mxu0 0
    %1618 = vmatpush1.bf16.msra.mxu0 %v1519
    %1619 = vmatprep.subr.bf16.mxu0 0
    %1620 = vmatpush1.bf16.msra.mxu0 %v1520
    %1621 = vmatprep.subr.bf16.mxu0 0
    %1622 = vmatpush1.bf16.msra.mxu0 %v1521
    %1623 = vmatprep.subr.bf16.mxu0 0
    %1624 = vmatpush1.bf16.msra.mxu0 %v1522
    %1625 = vmatprep.subr.bf16.mxu0 0
    %1626 = vmatpush1.bf16.msra.mxu0 %v1523
    %1627 = vmatprep.subr.bf16.mxu0 0
    %1628 = vmatpush1.bf16.msra.mxu0 %v1524
    %1629 = vmatprep.mubr.bf16.mxu0 %v608
    %1630 = vmatmul.mubr.bf16.gmra.mrb[0].mxu0 %v607
    %v1631 = vpop.f32.mrb[0].mxu0
    %v1632 = vadd.f32 %v1592, %v1631
    %v1633 = vpop.f32.mrb[0].mxu0
    %v1634 = vpop.f32.mrb[0].mxu0
    %v1635 = vpop.f32.mrb[0].mxu0
    %1636 = vdwg.mxu0
    %v1637 = vld [vmem:[%s8] sm:$0x1]
    %v1639 = vlaneseq
    %v1640 = vshrl.u32 %v1639, 7
    %v1641 = vsub.s32 0, %v1640
    %v1642 = vrot.slane %v1637, %v1641
    %v1644 = vadd.f32 %v1632, %v1642
    %v1645 = vmax.f32 %v1644, 0.0
    %v1646 = vpack.c.bf16 %v1645, %v1645
    %v1647 = vld [vmem:[%s9] sm:$0xf]
    %v1648 = vld [vmem:[%s9 + $0x4] sm:$0xf]
    %v1649 = vld [vmem:[%s9 + $0x8] sm:$0xf]
    %v1650 = vld [vmem:[%s9 + $0xc] sm:$0xf]
    %v1651 = vld [vmem:[%s9 + $0x10] sm:$0xf]
    %v1652 = vld [vmem:[%s9 + $0x14] sm:$0xf]
    %v1653 = vld [vmem:[%s9 + $0x18] sm:$0xf]
    %v1654 = vld [vmem:[%s9 + $0x1c] sm:$0xf]
    %v1655 = vld [vmem:[%s9 + $0x20] sm:$0xf]
    %v1656 = vld [vmem:[%s9 + $0x24] sm:$0xf]
    %v1657 = vld [vmem:[%s9 + $0x28] sm:$0xf]
    %v1658 = vld [vmem:[%s9 + $0x2c] sm:$0xf]
    %v1659 = vld [vmem:[%s9 + $0x30] sm:$0xf]
    %v1660 = vld [vmem:[%s9 + $0x34] sm:$0xf]
    %v1661 = vld [vmem:[%s9 + $0x38] sm:$0xf]
    %v1662 = vld [vmem:[%s9 + $0x3c] sm:$0xf]
    %v1663 = vld [vmem:[%s10] sm:$0x1]
    %v1665 = vlaneseq
    %v1666 = vshrl.u32 %v1665, 7
    %v1667 = vsub.s32 0, %v1666
    %v1668 = vrot.slane %v1663, %v1667
    %v1686 = vunpack.c.l.b16 %v1647
    %v1687 = vunpack.c.l.b16 %v1648
    %v1688 = vunpack.c.l.b16 %v1649
    %v1689 = vunpack.c.l.b16 %v1650
    %v1690 = vunpack.c.l.b16 %v1651
    %v1691 = vunpack.c.l.b16 %v1652
    %v1692 = vunpack.c.l.b16 %v1653
    %v1693 = vunpack.c.l.b16 %v1654
    %v1694 = vunpack.c.l.b16 %v1655
    %v1695 = vunpack.c.l.b16 %v1656
    %v1696 = vunpack.c.l.b16 %v1657
    %v1697 = vunpack.c.l.b16 %v1658
    %v1698 = vunpack.c.l.b16 %v1659
    %v1699 = vunpack.c.l.b16 %v1660
    %v1700 = vunpack.c.l.b16 %v1661
    %v1701 = vunpack.c.l.b16 %v1662
    %v1702 = vpack.c.b16 %v1687, %v1686
    %v1703 = vpack.c.b16 %v1689, %v1688
    %v1704 = vpack.c.b16 %v1691, %v1690
    %v1705 = vpack.c.b16 %v1693, %v1692
    %v1706 = vpack.c.b16 %v1695, %v1694
    %v1707 = vpack.c.b16 %v1697, %v1696
    %v1708 = vpack.c.b16 %v1699, %v1698
    %v1709 = vpack.c.b16 %v1701, %v1700
    %1718 = vmatprep.subr.bf16.mxu0 0
    %1719 = vmatpush1.bf16.msra.mxu0 %v1702
    %1720 = vmatprep.subr.bf16.mxu0 0
    %1721 = vmatpush1.bf16.msra.mxu0 %v1703
    %1722 = vmatprep.subr.bf16.mxu0 0
    %1723 = vmatpush1.bf16.msra.mxu0 %v1704
    %1724 = vmatprep.subr.bf16.mxu0 0
    %1725 = vmatpush1.bf16.msra.mxu0 %v1705
    %1726 = vmatprep.subr.bf16.mxu0 0
    %1727 = vmatpush1.bf16.msra.mxu0 %v1706
    %1728 = vmatprep.subr.bf16.mxu0 0
    %1729 = vmatpush1.bf16.msra.mxu0 %v1707
    %1730 = vmatprep.subr.bf16.mxu0 0
    %1731 = vmatpush1.bf16.msra.mxu0 %v1708
    %1732 = vmatprep.subr.bf16.mxu0 0
    %1733 = vmatpush1.bf16.msra.mxu0 %v1709
    %1734 = vmatprep.subr.bf16.mxu0 0
    %1735 = vmatpush1.bf16.msra.mxu0 0
    %1736 = vmatprep.subr.bf16.mxu0 0
    %1737 = vmatpush1.bf16.msra.mxu0 0
    %1738 = vmatprep.subr.bf16.mxu0 0
    %1739 = vmatpush1.bf16.msra.mxu0 0
    %1740 = vmatprep.subr.bf16.mxu0 0
    %1741 = vmatpush1.bf16.msra.mxu0 0
    %1742 = vmatprep.subr.bf16.mxu0 0
    %1743 = vmatpush1.bf16.msra.mxu0 0
    %1744 = vmatprep.subr.bf16.mxu0 0
    %1745 = vmatpush1.bf16.msra.mxu0 0
    %1746 = vmatprep.subr.bf16.mxu0 0
    %1747 = vmatpush1.bf16.msra.mxu0 0
    %1748 = vmatprep.subr.bf16.mxu0 0
    %1749 = vmatpush1.bf16.msra.mxu0 0
    %1750 = vmatprep.mubr.bf16.mxu0 0
    %1751 = vmatmul.mubr.bf16.gmra.mrb[0].mxu0 %v1646
    %v1752 = vpop.f32.mrb[0].mxu0
    %v1753 = vadd.f32 %v1668, %v1752
    %v1754 = vpop.f32.mrb[0].mxu0
    %v1755 = vpop.f32.mrb[0].mxu0
    %v1756 = vpop.f32.mrb[0].mxu0
    %1757 = vdwg.mxu0
    %v1758 = vmax.f32 %v1753, 0.0
    %v1759 = vpack.c.bf16 %v1758, %v1758
    %v1760 = vld [vmem:[%s11] sm:$0xf]
    %v1761 = vld [vmem:[%s11 + $0x4] sm:$0xf]
    %v1762 = vld [vmem:[%s11 + $0x8] sm:$0xf]
    %v1763 = vld [vmem:[%s11 + $0xc] sm:$0xf]
    %v1764 = vld [vmem:[%s11 + $0x10] sm:$0xf]
    %v1765 = vld [vmem:[%s11 + $0x14] sm:$0xf]
    %v1766 = vld [vmem:[%s11 + $0x18] sm:$0xf]
    %v1767 = vld [vmem:[%s11 + $0x1c] sm:$0xf]
    %v1768 = vld [vmem:[%s12] sm:$0x1]
    %v1770 = vlaneseq
    %v1771 = vshrl.u32 %v1770, 7
    %v1772 = vsub.s32 0, %v1771
    %v1773 = vrot.slane %v1768, %v1772
    %v1783 = vunpack.c.l.b16 %v1760
    %v1784 = vunpack.c.l.b16 %v1761
    %v1785 = vunpack.c.l.b16 %v1762
    %v1786 = vunpack.c.l.b16 %v1763
    %v1787 = vunpack.c.l.b16 %v1764
    %v1788 = vunpack.c.l.b16 %v1765
    %v1789 = vunpack.c.l.b16 %v1766
    %v1790 = vunpack.c.l.b16 %v1767
    %v1791 = vpack.c.b16 %v1784, %v1783
    %v1792 = vpack.c.b16 %v1786, %v1785
    %v1793 = vpack.c.b16 %v1788, %v1787
    %v1794 = vpack.c.b16 %v1790, %v1789
    %vm1799 = vcmask 523264
    %v1801 = vsel %vm1799, %v1759, 0
    %1803 = vmatprep.subr.bf16.mxu0 0
    %1804 = vmatpush1.bf16.msra.mxu0 %v1791
    %1805 = vmatprep.subr.bf16.mxu0 0
    %1806 = vmatpush1.bf16.msra.mxu0 %v1792
    %1807 = vmatprep.subr.bf16.mxu0 0
    %1808 = vmatpush1.bf16.msra.mxu0 %v1793
    %1809 = vmatprep.subr.bf16.mxu0 0
    %1810 = vmatpush1.bf16.msra.mxu0 %v1794
    %1811 = vmatprep.subr.bf16.mxu0 0
    %1812 = vmatpush1.bf16.msra.mxu0 0
    %1813 = vmatprep.subr.bf16.mxu0 0
    %1814 = vmatpush1.bf16.msra.mxu0 0
    %1815 = vmatprep.subr.bf16.mxu0 0
    %1816 = vmatpush1.bf16.msra.mxu0 0
    %1817 = vmatprep.subr.bf16.mxu0 0
    %1818 = vmatpush1.bf16.msra.mxu0 0
    %1819 = vmatprep.subr.bf16.mxu0 0
    %1820 = vmatpush1.bf16.msra.mxu0 0
    %1821 = vmatprep.subr.bf16.mxu0 0
    %1822 = vmatpush1.bf16.msra.mxu0 0
    %1823 = vmatprep.subr.bf16.mxu0 0
    %1824 = vmatpush1.bf16.msra.mxu0 0
    %1825 = vmatprep.subr.bf16.mxu0 0
    %1826 = vmatpush1.bf16.msra.mxu0 0
    %1827 = vmatprep.subr.bf16.mxu0 0
    %1828 = vmatpush1.bf16.msra.mxu0 0
    %1829 = vmatprep.subr.bf16.mxu0 0
    %1830 = vmatpush1.bf16.msra.mxu0 0
    %1831 = vmatprep.subr.bf16.mxu0 0
    %1832 = vmatpush1.bf16.msra.mxu0 0
    %1833 = vmatprep.subr.bf16.mxu0 0
    %1834 = vmatpush1.bf16.msra.mxu0 0
    %1835 = vmatprep.mubr.bf16.mxu0 0
    %1836 = vmatmul.mubr.bf16.gmra.mrb[0].mxu0 %v1801
    %v1837 = vpop.f32.mrb[0].mxu0
    %v1838 = vadd.f32 %v1773, %v1837
    %v1839 = vpop.f32.mrb[0].mxu0
    %v1840 = vpop.f32.mrb[0].mxu0
    %v1841 = vpop.f32.mrb[0].mxu0
    %1842 = vdwg.mxu0
    %vm1843 = vcmask 125952
    %1844 = vst.msk [vmem:[#allocation10] sm:$0xf] %vm1843, %v1838
    // Predicated region
    $region70: #{tpu_custom_call.1} parent=1 // pred_check
      _
    $region71: #{tpu_custom_call.1} parent=1 // pred_check_branch
      %1846 = sbr.rel (0) target = $region73
    $region72: #{tpu_custom_call.1} parent=1 // pred_region
      %s1848 = ssub.s32 64, 64
      %1849 = vsyncadd [#allocation4], %s1848
      %s1851 = sshll.u32 [#allocation10], 4
      %s1852 = int_to_ptr.vmem [resolvable:$true] %s1851
      %1854 = dma.vmem_to_hbm [thread:$0]  %s1852, 64, %s13, [#allocation4]
    $region73: #{tpu_custom_call.1} parent=1 // pred_fallthru
      _
    // Predicated region
    $region74: #{tpu_custom_call.1} parent=1 // pred_check
      _
    $region75: #{tpu_custom_call.1} parent=1 // pred_check_branch
      %1856 = sbr.rel (0) target = $region77
    $region76: #{tpu_custom_call.1} parent=1 // pred_region
      %1857 = dma.done [#allocation4], 64
    $region77: #{tpu_custom_call.1} parent=1 // pred_fallthru
      _
    %1858 = vsyncpa [#allocation3], 1
    %1859 = vsyncpa [#allocation6], 1
    %1860 = vsyncpa [#allocation9], 1
    %1861 = vsyncpa [#allocation4], 1

</llo_original>
